<compile_context>
chip_gen: v5e
topology: v5e:2x2
jax: 0.10.0
libtpu: 0.0.40
codegen_flags: <defaults>
</compile_context>

<pallas_src>
import functools

import jax
import jax.numpy as jnp
from jax import lax
from jax.experimental import pallas as pl
from jax.experimental.pallas import tpu as pltpu


def _basic_block_kernel(x_ref, w1_ref, s1_ref, b1_ref, w2_ref, s2_ref, b2_ref,
                        out_ref, xpad_scr, *, H, W, C, TH):
    """conv3x3 -> bn -> relu -> conv3x3 -> bn -> +residual -> relu (one row tile)."""
    th = pl.program_id(1)
    row0 = pl.multiple_of(th * TH, TH)           # first output row of this tile

    # ---- once per image (row tile 0): refresh halo border, copy interior ----
    @pl.when(th == 0)
    def _():
        zrow = jnp.zeros((2, W + 2, C), xpad_scr.dtype)
        zcol = jnp.zeros((H + 4, 1, C), xpad_scr.dtype)
        xpad_scr[pl.ds(0, 2), :, :] = zrow            # 2-row top pad
        xpad_scr[pl.ds(H + 2, 2), :, :] = zrow        # 2-row bottom pad
        xpad_scr[:, pl.ds(0, 1), :] = zcol            # left pad column
        xpad_scr[:, pl.ds(W + 1, 1), :] = zcol        # right pad column
        xpad_scr[pl.ds(2, H), pl.ds(1, W), :] = x_ref[0]

    taps = [(dy, dx) for dy in range(3) for dx in range(3)]

    # ---- conv1 on TH+2 rows (1-row recompute halo for conv2), 9 taps folded
    #      into the contraction dimension: one (rows, 9C) x (9C, C) matmul ----
    slab = xpad_scr[pl.ds(row0, TH + 4), :, :]                     # (TH+4, W+2, C) bf16
    p1 = jnp.concatenate(
        [slab[dy:dy + TH + 2, dx:dx + W, :] for dy, dx in taps], axis=-1)
    acc1 = jnp.dot(p1.reshape((TH + 2) * W, 9 * C), w1_ref[...],
                   preferred_element_type=jnp.float32)

    # bn1 (folded) + relu, f32.
    out1 = jnp.maximum(acc1 * s1_ref[...] + b1_ref[...], 0.0)
    out1 = out1.reshape(TH + 2, W, C)

    # Halo rows outside the image are conv2's zero padding, not conv1 outputs.
    r_ids = row0 - 1 + lax.broadcasted_iota(jnp.int32, (TH + 2, 1, 1), 0)
    out1 = jnp.where((r_ids >= 0) & (r_ids < H), out1, 0.0)

    # Width zero-pad + bf16 for the second MXU matmul.
    zc = jnp.zeros((TH + 2, 1, C), jnp.float32)
    out1p = jnp.concatenate([zc, out1, zc], axis=1).astype(jnp.bfloat16)

    # ---- conv2, same folded-tap single matmul ----
    p2 = jnp.concatenate(
        [out1p[dy:dy + TH, dx:dx + W, :] for dy, dx in taps], axis=-1)
    acc2 = jnp.dot(p2.reshape(TH * W, 9 * C), w2_ref[...],
                   preferred_element_type=jnp.float32)

    # bn2 + residual + relu (f32 elementwise).
    out2 = acc2 * s2_ref[...] + b2_ref[...]
    residual = x_ref[0, pl.ds(row0, TH), :, :].astype(jnp.float32)
    out2 = jnp.maximum(out2 + residual.reshape(TH * W, C), 0.0)
    out_ref[0] = out2.reshape(TH, W, C)


def _pick_row_tile(N, H):
    """Largest row tile that still gives >= 8 grid steps (pipeline depth)."""
    for t in (32, 16, 8, 4, 2, 1):
        if H % t == 0 and N * (H // t) >= 8:
            return t
    for t in (32, 16, 8, 4, 2, 1):
        if H % t == 0:
            return t
    return 1


def basic_block(x_nchw, w1_oihw, bn1, w2_oihw, bn2, eps=1e-5, row_tile=None):
    """BasicBlock forward (stride=1, downsample=None => inplanes == planes)."""
    N, C, H, W = x_nchw.shape
    assert w1_oihw.shape == (C, C, 3, 3), "kernel assumes inplanes == planes, stride=1"
    assert w2_oihw.shape == (C, C, 3, 3)
    TH = row_tile or _pick_row_tile(N, H)
    assert H % TH == 0

    # NHWC, bf16 activations (single input, padding done in-kernel).
    x = jnp.transpose(x_nchw, (0, 2, 3, 1)).astype(jnp.bfloat16)

    # Weights: OIHW -> (kh, kw, cin, cout) -> (9*Cin, Cout), bf16 MXU operands.
    w1 = jnp.transpose(w1_oihw, (2, 3, 1, 0)).reshape(9 * C, C).astype(jnp.bfloat16)
    w2 = jnp.transpose(w2_oihw, (2, 3, 1, 0)).reshape(9 * C, C).astype(jnp.bfloat16)

    def fold(bn_params):
        gamma, beta, mean, var = bn_params
        scale = gamma / jnp.sqrt(var + eps)
        bias = beta - mean * scale
        return (scale.reshape(1, C).astype(jnp.float32),
                bias.reshape(1, C).astype(jnp.float32))

    s1, b1 = fold(bn1)
    s2, b2 = fold(bn2)

    kernel = functools.partial(_basic_block_kernel, H=H, W=W, C=C, TH=TH)

    out_nhwc = pl.pallas_call(
        kernel,
        out_shape=jax.ShapeDtypeStruct((N, H, W, C), jnp.float32),
        grid_spec=pltpu.PrefetchScalarGridSpec(
            num_scalar_prefetch=0,
            grid=(N, H // TH),
            in_specs=[
                # Whole unpadded image per batch element; block index is
                # constant along the row-tile axis, so it is only re-DMA'd
                # when the batch index changes.
                pl.BlockSpec((1, H, W, C), lambda n, t: (n, 0, 0, 0)),
                pl.BlockSpec((9 * C, C), lambda n, t: (0, 0)),
                pl.BlockSpec((1, C), lambda n, t: (0, 0)),
                pl.BlockSpec((1, C), lambda n, t: (0, 0)),
                pl.BlockSpec((9 * C, C), lambda n, t: (0, 0)),
                pl.BlockSpec((1, C), lambda n, t: (0, 0)),
                pl.BlockSpec((1, C), lambda n, t: (0, 0)),
            ],
            out_specs=pl.BlockSpec((1, TH, W, C), lambda n, t: (n, t, 0, 0)),
            scratch_shapes=[
                pltpu.VMEM((H + 4, W + 2, C), jnp.bfloat16),   # zero-padded image
            ],
        ),
        compiler_params=pltpu.CompilerParams(
            # batch axis shardable across v7x TensorCores; row axis sequential
            # so the padded scratch filled at t == 0 stays valid for t > 0.
            dimension_semantics=("parallel", "arbitrary")),
    )(x, w1, s1, b1, w2, s2, b2)

    return jnp.transpose(out_nhwc, (0, 3, 1, 2)).astype(x_nchw.dtype)


def ref_basic_block(x, w1, bn1, w2, bn2, eps=1e-5):
    """Pure-JAX f32 reference (NCHW, eval-mode BN), mirrors the PyTorch forward."""
    def conv(z, w):
        return lax.conv_general_dilated(
            z, w, window_strides=(1, 1), padding=((1, 1), (1, 1)),
            dimension_numbers=('NCHW', 'OIHW', 'NCHW'))

    def bn(z, p):
        gamma, beta, mean, var = (q[None, :, None, None] for q in p)
        return (z - mean) / jnp.sqrt(var + eps) * gamma + beta

    out = jax.nn.relu(bn(conv(x, w1), bn1))
    out = bn(conv(out, w2), bn2)
    return jax.nn.relu(out + x)


if __name__ == "__main__":
    N, C, H, W = 2, 4, 16, 16   # inplanes == planes == 4, stride=1, no downsample

    key = jax.random.PRNGKey(0)
    ks = jax.random.split(key, 11)

    x = jax.random.normal(ks[0], (N, C, H, W), jnp.float32)

    # conv weights in PyTorch OIHW layout
    w1 = jax.random.normal(ks[1], (C, C, 3, 3), jnp.float32) * 0.2
    w2 = jax.random.normal(ks[2], (C, C, 3, 3), jnp.float32) * 0.2

    # BN params: (gamma, beta, running_mean, running_var)
    bn1 = (1.0 + 0.1 * jax.random.normal(ks[3], (C,), jnp.float32),
           0.1 * jax.random.normal(ks[4], (C,), jnp.float32),
           0.1 * jax.random.normal(ks[5], (C,), jnp.float32),
           jax.random.uniform(ks[6], (C,), jnp.float32, 0.5, 1.5))
    bn2 = (1.0 + 0.1 * jax.random.normal(ks[7], (C,), jnp.float32),
           0.1 * jax.random.normal(ks[8], (C,), jnp.float32),
           0.1 * jax.random.normal(ks[9], (C,), jnp.float32),
           jax.random.uniform(ks[10], (C,), jnp.float32, 0.5, 1.5))

    out = jax.block_until_ready(basic_block(x, w1, bn1, w2, bn2))
    ref = jax.block_until_ready(ref_basic_block(x, w1, bn1, w2, bn2))

    assert out.shape == (N, C, H, W)
    max_err = float(jnp.max(jnp.abs(out - ref)))
    # bf16 MXU operands with f32 accumulation => bf16-level tolerance vs f32 ref.
    assert jnp.allclose(out, ref, atol=1e-1, rtol=1e-1), max_err

    print("KERNEL_OK")
</pallas_src>

<mosaic_0001>
module attributes {stable_mosaic.version = 11 : i64} {
  func.func @_basic_block_kernel(%arg0: i32, %arg1: i32, %arg2: memref<1x16x16x4xbf16, #tpu.memory_space<vmem>>, %arg3: memref<36x4xbf16, #tpu.memory_space<vmem>>, %arg4: memref<1x4xf32, #tpu.memory_space<vmem>>, %arg5: memref<1x4xf32, #tpu.memory_space<vmem>>, %arg6: memref<36x4xbf16, #tpu.memory_space<vmem>>, %arg7: memref<1x4xf32, #tpu.memory_space<vmem>>, %arg8: memref<1x4xf32, #tpu.memory_space<vmem>>, %arg9: memref<1x4x16x4xf32, #tpu.memory_space<vmem>>, %arg10: memref<20x18x4xbf16, #tpu.memory_space<vmem>>) attributes {dimension_semantics = [#tpu.dimension_semantics<parallel>, #tpu.dimension_semantics<arbitrary>], iteration_bounds = array<i64: 2, 4>, scalar_prefetch = 0 : i64, scratch_operands = 1 : i64, tpu.core_type = #tpu.core_type<tc>, window_params = [{transform_indices = @transform_0, window_bounds = array<i64: 1, 16, 16, 4>}, {pipeline_mode = #tpu.pipeline_mode<synchronous>, transform_indices = @transform_1, window_bounds = array<i64: 36, 4>}, {pipeline_mode = #tpu.pipeline_mode<synchronous>, transform_indices = @transform_2, window_bounds = array<i64: 1, 4>}, {pipeline_mode = #tpu.pipeline_mode<synchronous>, transform_indices = @transform_3, window_bounds = array<i64: 1, 4>}, {pipeline_mode = #tpu.pipeline_mode<synchronous>, transform_indices = @transform_4, window_bounds = array<i64: 36, 4>}, {pipeline_mode = #tpu.pipeline_mode<synchronous>, transform_indices = @transform_5, window_bounds = array<i64: 1, 4>}, {pipeline_mode = #tpu.pipeline_mode<synchronous>, transform_indices = @transform_6, window_bounds = array<i64: 1, 4>}, {transform_indices = @transform_7, window_bounds = array<i64: 1, 4, 16, 4>}]} {
    %c4_i32 = arith.constant 4 : i32
    %0 = arith.muli %arg1, %c4_i32 : i32
    %1 = tpu.assume_multiple %0, 4 : i32
    %c0_i32 = arith.constant 0 : i32
    %2 = arith.cmpi eq, %arg1, %c0_i32 : i32
    %3 = arith.extui %2 : i1 to i32
    %c0_i32_0 = arith.constant 0 : i32
    %4 = arith.cmpi ne, %3, %c0_i32_0 : i32
    scf.if %4 {
      %cst_27 = arith.constant 0.000000e+00 : bf16
      %76 = vector.broadcast %cst_27 : bf16 to vector<2x18x4xbf16>
      %cst_28 = arith.constant 0.000000e+00 : bf16
      %77 = vector.broadcast %cst_28 : bf16 to vector<20x1x4xbf16>
      %c0_29 = arith.constant 0 : index
      %c0_30 = arith.constant 0 : index
      %c0_31 = arith.constant 0 : index
      %78 = vector.load %arg10[%c0_29, %c0_30, %c0_31] : memref<20x18x4xbf16, #tpu.memory_space<vmem>>, vector<2x18x4xbf16>
      tpu.vector_store %arg10[%c0_29, %c0_30, %c0_31], %76 {strides = array<i32>} : memref<20x18x4xbf16, #tpu.memory_space<vmem>>, vector<2x18x4xbf16>,
      %c18 = arith.constant 18 : index
      %c0_32 = arith.constant 0 : index
      %c0_33 = arith.constant 0 : index
      %79 = vector.load %arg10[%c18, %c0_32, %c0_33] : memref<20x18x4xbf16, #tpu.memory_space<vmem>>, vector<2x18x4xbf16>
      tpu.vector_store %arg10[%c18, %c0_32, %c0_33], %76 {strides = array<i32>} : memref<20x18x4xbf16, #tpu.memory_space<vmem>>, vector<2x18x4xbf16>,
      %c0_34 = arith.constant 0 : index
      %c0_35 = arith.constant 0 : index
      %c0_36 = arith.constant 0 : index
      %80 = vector.load %arg10[%c0_34, %c0_35, %c0_36] : memref<20x18x4xbf16, #tpu.memory_space<vmem>>, vector<20x1x4xbf16>
      tpu.vector_store %arg10[%c0_34, %c0_35, %c0_36], %77 {strides = array<i32>} : memref<20x18x4xbf16, #tpu.memory_space<vmem>>, vector<20x1x4xbf16>,
      %c0_37 = arith.constant 0 : index
      %c17 = arith.constant 17 : index
      %c0_38 = arith.constant 0 : index
      %81 = vector.load %arg10[%c0_37, %c17, %c0_38] : memref<20x18x4xbf16, #tpu.memory_space<vmem>>, vector<20x1x4xbf16>
      tpu.vector_store %arg10[%c0_37, %c17, %c0_38], %77 {strides = array<i32>} : memref<20x18x4xbf16, #tpu.memory_space<vmem>>, vector<20x1x4xbf16>,
      %c0_39 = arith.constant 0 : index
      %c0_40 = arith.constant 0 : index
      %c0_41 = arith.constant 0 : index
      %c0_42 = arith.constant 0 : index
      %82 = vector.load %arg2[%c0_39, %c0_40, %c0_41, %c0_42] : memref<1x16x16x4xbf16, #tpu.memory_space<vmem>>, vector<1x16x16x4xbf16>
      %83 = vector.shape_cast %82 : vector<1x16x16x4xbf16> to vector<16x16x4xbf16>
      %c2 = arith.constant 2 : index
      %c1 = arith.constant 1 : index
      %c0_43 = arith.constant 0 : index
      %84 = vector.load %arg10[%c2, %c1, %c0_43] : memref<20x18x4xbf16, #tpu.memory_space<vmem>>, vector<16x16x4xbf16>
      tpu.vector_store %arg10[%c2, %c1, %c0_43], %83 {strides = array<i32>} : memref<20x18x4xbf16, #tpu.memory_space<vmem>>, vector<16x16x4xbf16>,
    } else {
    }
    %5 = arith.index_cast %1 : i32 to index
    %c0 = arith.constant 0 : index
    %c0_1 = arith.constant 0 : index
    %6 = vector.load %arg10[%5, %c0, %c0_1] : memref<20x18x4xbf16, #tpu.memory_space<vmem>>, vector<8x18x4xbf16>
    %7 = vector.extract_strided_slice %6 {offsets = [0, 0, 0], sizes = [6, 16, 4], strides = [1, 1, 1]} : vector<8x18x4xbf16> to vector<6x16x4xbf16>
    %8 = vector.extract_strided_slice %6 {offsets = [0, 1, 0], sizes = [6, 16, 4], strides = [1, 1, 1]} : vector<8x18x4xbf16> to vector<6x16x4xbf16>
    %9 = vector.extract_strided_slice %6 {offsets = [0, 2, 0], sizes = [6, 16, 4], strides = [1, 1, 1]} : vector<8x18x4xbf16> to vector<6x16x4xbf16>
    %10 = vector.extract_strided_slice %6 {offsets = [1, 0, 0], sizes = [6, 16, 4], strides = [1, 1, 1]} : vector<8x18x4xbf16> to vector<6x16x4xbf16>
    %11 = vector.extract_strided_slice %6 {offsets = [1, 1, 0], sizes = [6, 16, 4], strides = [1, 1, 1]} : vector<8x18x4xbf16> to vector<6x16x4xbf16>
    %12 = vector.extract_strided_slice %6 {offsets = [1, 2, 0], sizes = [6, 16, 4], strides = [1, 1, 1]} : vector<8x18x4xbf16> to vector<6x16x4xbf16>
    %13 = vector.extract_strided_slice %6 {offsets = [2, 0, 0], sizes = [6, 16, 4], strides = [1, 1, 1]} : vector<8x18x4xbf16> to vector<6x16x4xbf16>
    %14 = vector.extract_strided_slice %6 {offsets = [2, 1, 0], sizes = [6, 16, 4], strides = [1, 1, 1]} : vector<8x18x4xbf16> to vector<6x16x4xbf16>
    %15 = vector.extract_strided_slice %6 {offsets = [2, 2, 0], sizes = [6, 16, 4], strides = [1, 1, 1]} : vector<8x18x4xbf16> to vector<6x16x4xbf16>
    %16 = tpu.concatenate %7, %8, %9, %10, %11, %12, %13, %14, %15 in 2 : vector<6x16x4xbf16>, vector<6x16x4xbf16>, vector<6x16x4xbf16>, vector<6x16x4xbf16>, vector<6x16x4xbf16>, vector<6x16x4xbf16>, vector<6x16x4xbf16>, vector<6x16x4xbf16>, vector<6x16x4xbf16> -> vector<6x16x36xbf16>
    %17 = vector.shape_cast %16 : vector<6x16x36xbf16> to vector<96x36xbf16>
    %c0_2 = arith.constant 0 : index
    %c0_3 = arith.constant 0 : index
    %18 = vector.load %arg3[%c0_2, %c0_3] : memref<36x4xbf16, #tpu.memory_space<vmem>>, vector<36x4xbf16>
    %cst = arith.constant dense<0.000000e+00> : vector<96x4xf32>
    %19 = tpu.matmul %17, %18, %cst {dimension_numbers = #tpu.dot_dimension_numbers<[1], [0], [0], [1], [0, 0, 1, 1], [], []>} : vector<96x36xbf16>, vector<36x4xbf16>, vector<96x4xf32> -> vector<96x4xf32>
    %c0_4 = arith.constant 0 : index
    %c0_5 = arith.constant 0 : index
    %20 = vector.load %arg4[%c0_4, %c0_5] : memref<1x4xf32, #tpu.memory_space<vmem>>, vector<1x4xf32>
    %21 = vector.broadcast %20 : vector<1x4xf32> to vector<96x4xf32>
    %22 = arith.mulf %19, %21 : vector<96x4xf32>
    %c0_6 = arith.constant 0 : index
    %c0_7 = arith.constant 0 : index
    %23 = vector.load %arg5[%c0_6, %c0_7] : memref<1x4xf32, #tpu.memory_space<vmem>>, vector<1x4xf32>
    %24 = vector.broadcast %23 : vector<1x4xf32> to vector<96x4xf32>
    %25 = arith.addf %22, %24 : vector<96x4xf32>
    %cst_8 = arith.constant 0.000000e+00 : f32
    %26 = vector.broadcast %cst_8 : f32 to vector<96x4xf32>
    %27 = arith.maximumf %25, %26 : vector<96x4xf32>
    %28 = vector.shape_cast %27 : vector<96x4xf32> to vector<6x16x4xf32>
    %c1_i32 = arith.constant 1 : i32
    %29 = arith.subi %1, %c1_i32 : i32
    %30 = tpu.iota {dimensions = array<i32: 0>} : vector<6x1x1xi32>
    %31 = vector.broadcast %29 : i32 to vector<6x1x1xi32>
    %32 = arith.addi %31, %30 : vector<6x1x1xi32>
    %c0_i32_9 = arith.constant 0 : i32
    %33 = vector.broadcast %c0_i32_9 : i32 to vector<6x1x1xi32>
    %34 = arith.cmpi sge, %32, %33 : vector<6x1x1xi32>
    %c16_i32 = arith.constant 16 : i32
    %35 = vector.broadcast %c16_i32 : i32 to vector<6x1x1xi32>
    %36 = arith.cmpi slt, %32, %35 : vector<6x1x1xi32>
    %37 = arith.andi %34, %36 : vector<6x1x1xi1>
    %cst_10 = arith.constant 0.000000e+00 : f32
    %38 = vector.shape_cast %37 : vector<6x1x1xi1> to vector<6x1x1xi1>
    %39 = vector.broadcast %38 : vector<6x1x1xi1> to vector<6x16x4xi1>
    %40 = vector.broadcast %cst_10 : f32 to vector<6x16x4xf32>
    %41 = arith.select %39, %28, %40 : vector<6x16x4xi1>, vector<6x16x4xf32>
    %cst_11 = arith.constant 0.000000e+00 : f32
    %42 = vector.broadcast %cst_11 : f32 to vector<6x1x4xf32>
    %43 = tpu.concatenate %42, %41, %42 in 1 : vector<6x1x4xf32>, vector<6x16x4xf32>, vector<6x1x4xf32> -> vector<6x18x4xf32>
    %44 = arith.truncf %43 : vector<6x18x4xf32> to vector<6x18x4xbf16>
    %45 = vector.extract_strided_slice %44 {offsets = [0, 0, 0], sizes = [4, 16, 4], strides = [1, 1, 1]} : vector<6x18x4xbf16> to vector<4x16x4xbf16>
    %46 = vector.extract_strided_slice %44 {offsets = [0, 1, 0], sizes = [4, 16, 4], strides = [1, 1, 1]} : vector<6x18x4xbf16> to vector<4x16x4xbf16>
    %47 = vector.extract_strided_slice %44 {offsets = [0, 2, 0], sizes = [4, 16, 4], strides = [1, 1, 1]} : vector<6x18x4xbf16> to vector<4x16x4xbf16>
    %48 = vector.extract_strided_slice %44 {offsets = [1, 0, 0], sizes = [4, 16, 4], strides = [1, 1, 1]} : vector<6x18x4xbf16> to vector<4x16x4xbf16>
    %49 = vector.extract_strided_slice %44 {offsets = [1, 1, 0], sizes = [4, 16, 4], strides = [1, 1, 1]} : vector<6x18x4xbf16> to vector<4x16x4xbf16>
    %50 = vector.extract_strided_slice %44 {offsets = [1, 2, 0], sizes = [4, 16, 4], strides = [1, 1, 1]} : vector<6x18x4xbf16> to vector<4x16x4xbf16>
    %51 = vector.extract_strided_slice %44 {offsets = [2, 0, 0], sizes = [4, 16, 4], strides = [1, 1, 1]} : vector<6x18x4xbf16> to vector<4x16x4xbf16>
    %52 = vector.extract_strided_slice %44 {offsets = [2, 1, 0], sizes = [4, 16, 4], strides = [1, 1, 1]} : vector<6x18x4xbf16> to vector<4x16x4xbf16>
    %53 = vector.extract_strided_slice %44 {offsets = [2, 2, 0], sizes = [4, 16, 4], strides = [1, 1, 1]} : vector<6x18x4xbf16> to vector<4x16x4xbf16>
    %54 = tpu.concatenate %45, %46, %47, %48, %49, %50, %51, %52, %53 in 2 : vector<4x16x4xbf16>, vector<4x16x4xbf16>, vector<4x16x4xbf16>, vector<4x16x4xbf16>, vector<4x16x4xbf16>, vector<4x16x4xbf16>, vector<4x16x4xbf16>, vector<4x16x4xbf16>, vector<4x16x4xbf16> -> vector<4x16x36xbf16>
    %55 = vector.shape_cast %54 : vector<4x16x36xbf16> to vector<64x36xbf16>
    %c0_12 = arith.constant 0 : index
    %c0_13 = arith.constant 0 : index
    %56 = vector.load %arg6[%c0_12, %c0_13] : memref<36x4xbf16, #tpu.memory_space<vmem>>, vector<36x4xbf16>
    %cst_14 = arith.constant dense<0.000000e+00> : vector<64x4xf32>
    %57 = tpu.matmul %55, %56, %cst_14 {dimension_numbers = #tpu.dot_dimension_numbers<[1], [0], [0], [1], [0, 0, 1, 1], [], []>} : vector<64x36xbf16>, vector<36x4xbf16>, vector<64x4xf32> -> vector<64x4xf32>
    %c0_15 = arith.constant 0 : index
    %c0_16 = arith.constant 0 : index
    %58 = vector.load %arg7[%c0_15, %c0_16] : memref<1x4xf32, #tpu.memory_space<vmem>>, vector<1x4xf32>
    %59 = vector.broadcast %58 : vector<1x4xf32> to vector<64x4xf32>
    %60 = arith.mulf %57, %59 : vector<64x4xf32>
    %c0_17 = arith.constant 0 : index
    %c0_18 = arith.constant 0 : index
    %61 = vector.load %arg8[%c0_17, %c0_18] : memref<1x4xf32, #tpu.memory_space<vmem>>, vector<1x4xf32>
    %62 = vector.broadcast %61 : vector<1x4xf32> to vector<64x4xf32>
    %63 = arith.addf %60, %62 : vector<64x4xf32>
    %c0_19 = arith.constant 0 : index
    %64 = arith.index_cast %1 : i32 to index
    %c0_20 = arith.constant 0 : index
    %c0_21 = arith.constant 0 : index
    %65 = vector.load %arg2[%c0_19, %64, %c0_20, %c0_21] : memref<1x16x16x4xbf16, #tpu.memory_space<vmem>>, vector<1x4x16x4xbf16>
    %66 = vector.shape_cast %65 : vector<1x4x16x4xbf16> to vector<4x16x4xbf16>
    %67 = arith.extf %66 : vector<4x16x4xbf16> to vector<4x16x4xf32>
    %68 = vector.shape_cast %67 : vector<4x16x4xf32> to vector<64x4xf32>
    %69 = arith.addf %63, %68 : vector<64x4xf32>
    %cst_22 = arith.constant 0.000000e+00 : f32
    %70 = vector.broadcast %cst_22 : f32 to vector<64x4xf32>
    %71 = arith.maximumf %69, %70 : vector<64x4xf32>
    %72 = vector.shape_cast %71 : vector<64x4xf32> to vector<4x16x4xf32>
    %c0_23 = arith.constant 0 : index
    %c0_24 = arith.constant 0 : index
    %c0_25 = arith.constant 0 : index
    %c0_26 = arith.constant 0 : index
    %73 = vector.load %arg9[%c0_23, %c0_24, %c0_25, %c0_26] : memref<1x4x16x4xf32, #tpu.memory_space<vmem>>, vector<1x4x16x4xf32>
    %74 = vector.shape_cast %73 : vector<1x4x16x4xf32> to vector<4x16x4xf32>
    %75 = vector.shape_cast %72 : vector<4x16x4xf32> to vector<1x4x16x4xf32>
    tpu.vector_store %arg9[%c0_23, %c0_24, %c0_25, %c0_26], %75 {strides = array<i32>} : memref<1x4x16x4xf32, #tpu.memory_space<vmem>>, vector<1x4x16x4xf32>,
    return
  }
  func.func @transform_0(%arg0: i32, %arg1: i32) -> (i32, i32, i32, i32) {
    %c0_i32 = arith.constant 0 : i32
    %c0_i32_0 = arith.constant 0 : i32
    %c0_i32_1 = arith.constant 0 : i32
    %c0_i32_2 = arith.constant 0 : i32
    return %arg0, %c0_i32, %c0_i32_0, %c0_i32_1 : i32, i32, i32, i32
  }
  func.func @transform_1(%arg0: i32, %arg1: i32) -> (i32, i32) {
    %c0_i32 = arith.constant 0 : i32
    %c0_i32_0 = arith.constant 0 : i32
    %c0_i32_1 = arith.constant 0 : i32
    return %c0_i32, %c0_i32_0 : i32, i32
  }
  func.func @transform_2(%arg0: i32, %arg1: i32) -> (i32, i32) {
    %c0_i32 = arith.constant 0 : i32
    %c0_i32_0 = arith.constant 0 : i32
    %c0_i32_1 = arith.constant 0 : i32
    return %c0_i32, %c0_i32_0 : i32, i32
  }
  func.func @transform_3(%arg0: i32, %arg1: i32) -> (i32, i32) {
    %c0_i32 = arith.constant 0 : i32
    %c0_i32_0 = arith.constant 0 : i32
    %c0_i32_1 = arith.constant 0 : i32
    return %c0_i32, %c0_i32_0 : i32, i32
  }
  func.func @transform_4(%arg0: i32, %arg1: i32) -> (i32, i32) {
    %c0_i32 = arith.constant 0 : i32
    %c0_i32_0 = arith.constant 0 : i32
    %c0_i32_1 = arith.constant 0 : i32
    return %c0_i32, %c0_i32_0 : i32, i32
  }
  func.func @transform_5(%arg0: i32, %arg1: i32) -> (i32, i32) {
    %c0_i32 = arith.constant 0 : i32
    %c0_i32_0 = arith.constant 0 : i32
    %c0_i32_1 = arith.constant 0 : i32
    return %c0_i32, %c0_i32_0 : i32, i32
  }
  func.func @transform_6(%arg0: i32, %arg1: i32) -> (i32, i32) {
    %c0_i32 = arith.constant 0 : i32
    %c0_i32_0 = arith.constant 0 : i32
    %c0_i32_1 = arith.constant 0 : i32
    return %c0_i32, %c0_i32_0 : i32, i32
  }
  func.func @transform_7(%arg0: i32, %arg1: i32) -> (i32, i32, i32, i32) {
    %c0_i32 = arith.constant 0 : i32
    %c0_i32_0 = arith.constant 0 : i32
    %c0_i32_1 = arith.constant 0 : i32
    return %arg0, %arg1, %c0_i32, %c0_i32_0 : i32, i32, i32, i32
  }
}

</mosaic_0001>

<llo_original>
// kernel: tpu_custom_call.1
$region0: #{tpu_custom_call.1}
  #allocation0 [shape = 'u32[]', space=smem, size = 0x4, offset = 0x4, fixed_abs, tag = 'smem constant byte address 0x4 - core index']
  #allocation1 [shape = 'u32[72,128]{1,0:T(1,128)}', space=vmem, size = 0x9000, scoped, tag = 'internal scratch']
  #allocation2 [shape = 'bf16[20,18,4]{2,1,0:T(8,128)(2,1)}', space=vmem, size = 0x1e000, scoped, tag = 'scratch operand']
  %s0 = inlined_call_operand.vmem [shape: bf16[2,16,16,4], index: 0, kind: input, shape index: {}]
  %s1 = inlined_call_operand.vmem [shape: bf16[36,4], index: 1, kind: input, shape index: {}]
  %s2 = inlined_call_operand.vmem [shape: f32[1,4], index: 2, kind: input, shape index: {}]
  %s3 = inlined_call_operand.vmem [shape: f32[1,4], index: 3, kind: input, shape index: {}]
  %s4 = inlined_call_operand.vmem [shape: bf16[36,4], index: 4, kind: input, shape index: {}]
  %s5 = inlined_call_operand.vmem [shape: f32[1,4], index: 5, kind: input, shape index: {}]
  %s6 = inlined_call_operand.vmem [shape: f32[1,4], index: 6, kind: input, shape index: {}]
  %s7 = inlined_call_operand.vmem [shape: f32[2,16,16,4], index: 7, kind: output, shape index: {}]
  %s8 = sld [smem:[#allocation0]]
  $region65: #{tpu_custom_call.1} parent=0
    _
  %s10 = ssub.s32 1, %s8
  %s11 = scalar_select 0, %s10, %s8
  loop: start=0, step=1, limit=10
  $region2: #{tpu_custom_call.1} parent=0 // loop_pre_header
    _
  $region3: #{tpu_custom_call.1} parent=0 // loop_header
    %s13 = sphi 0, %s17
    %p14 = scmp.ge.s32.totalorder %s13, 10
    %s20 = sphi 0, %s32
    %s21 = sphi 0, %s28
    %s22 = sphi 0, %s20
    %s23 = sphi 0, %s21
    %s24 = sphi 0, %s22
    %s25 = sphi 0, %s23
    %s35 = sphi 0, %s37
    %s38 = sphi 0, %s35
    %s39 = sphi 0, %s38
    %s55 = sphi 0, %s39
    %s59 = sphi 0, %s59
    %s61 = sphi 0, %s59
    %s62 = sphi 0, %s61
    %s76 = sphi 0, %s62
    %s80 = sphi 0, %s80
    %s82 = sphi 0, %s80
    %s83 = sphi 0, %s82
    %s97 = sphi 0, %s83
    %s101 = sphi 0, %s101
    %s103 = sphi 0, %s101
    %s104 = sphi 0, %s103
    %s118 = sphi 0, %s104
    %s122 = sphi 0, %s122
    %s124 = sphi 0, %s122
    %s125 = sphi 0, %s124
    %s139 = sphi 0, %s125
    %s143 = sphi 0, %s143
    %s145 = sphi 0, %s143
    %s146 = sphi 0, %s145
    %s160 = sphi 0, %s146
    %s164 = sphi 0, %s164
    %s166 = sphi 0, %s164
    %s167 = sphi 0, %s166
    %s181 = sphi 0, %s167
    %s189 = sphi 0, %s191
    %s192 = sphi 0, %s189
    %s193 = sphi 0, %s192
    %s209 = sphi 0, %s193
  $region4: #{tpu_custom_call.1} parent=0 // loop_header_branch
    %16 = sbr.rel (%p14) target = $region8
  $region5: #{tpu_custom_call.1} parent=0 // loop_body
    %s18 = ssub.s32 %s13, 1
    %s19 = ssub.s32 %s13, 2
    %s26 = sadd.s32 1, %s21
    %p27 = scmp.ge.s32.totalorder %s26, 4
    %s28 = scalar_select %p27, 0, %s26
    %s29 = sadd.s32 1, %s20
    %s30 = scalar_select %p27, %s29, %s20
    %p31 = scmp.ge.s32.totalorder %s30, 2
    %s32 = scalar_select %p31, 0, %s30
    %s33 = ssub.s32 %s20, %s32
    %p34 = scmp.eq.s32.totalorder %s33, 0
    %s36 = sadd.s32 %s35, 1
    %s37 = scalar_select %p34, %s35, %s36
    %p40 = pneg %p34
    %p41 = scmp.eq.s32.totalorder %s13, 7
    %p42 = por %p40, %p41
    %p43 = scmp.ne.s32.totalorder %s35, %s38
    %p44 = scmp.eq.s32.totalorder %s13, 0
    %p45 = por %p43, %p44
    %p46 = scmp.ne.s32.totalorder %s35, %s38
    %p47 = scmp.eq.s32.totalorder %s18, 7
    %p48 = por %p46, %p47
    %p49 = scmp.ne.s32.totalorder %s38, %s39
    %p50 = scmp.eq.s32.totalorder %s18, 0
    %p51 = por %p49, %p50
    %p52 = scmp.ne.s32.totalorder %s38, %s39
    %p53 = scmp.eq.s32.totalorder %s19, 7
    %p54 = por %p52, %p53
    %p56 = scmp.ne.s32.totalorder %s39, %s55
    %p57 = scmp.eq.s32.totalorder %s19, 0
    %p58 = por %p56, %p57
    %s60 = sadd.s32 %s59, 1
    %p63 = scmp.eq.s32.totalorder %s13, 7
    %p64 = scmp.ne.s32.totalorder %s59, %s61
    %p65 = scmp.eq.s32.totalorder %s13, 0
    %p66 = por %p64, %p65
    %p67 = scmp.ne.s32.totalorder %s59, %s61
    %p68 = scmp.eq.s32.totalorder %s18, 7
    %p69 = por %p67, %p68
    %p70 = scmp.ne.s32.totalorder %s61, %s62
    %p71 = scmp.eq.s32.totalorder %s18, 0
    %p72 = por %p70, %p71
    %p73 = scmp.ne.s32.totalorder %s61, %s62
    %p74 = scmp.eq.s32.totalorder %s19, 7
    %p75 = por %p73, %p74
    %p77 = scmp.ne.s32.totalorder %s62, %s76
    %p78 = scmp.eq.s32.totalorder %s19, 0
    %p79 = por %p77, %p78
    %s81 = sadd.s32 %s80, 1
    %p84 = scmp.eq.s32.totalorder %s13, 7
    %p85 = scmp.ne.s32.totalorder %s80, %s82
    %p86 = scmp.eq.s32.totalorder %s13, 0
    %p87 = por %p85, %p86
    %p88 = scmp.ne.s32.totalorder %s80, %s82
    %p89 = scmp.eq.s32.totalorder %s18, 7
    %p90 = por %p88, %p89
    %p91 = scmp.ne.s32.totalorder %s82, %s83
    %p92 = scmp.eq.s32.totalorder %s18, 0
    %p93 = por %p91, %p92
    %p94 = scmp.ne.s32.totalorder %s82, %s83
    %p95 = scmp.eq.s32.totalorder %s19, 7
    %p96 = por %p94, %p95
    %p98 = scmp.ne.s32.totalorder %s83, %s97
    %p99 = scmp.eq.s32.totalorder %s19, 0
    %p100 = por %p98, %p99
    %s102 = sadd.s32 %s101, 1
    %p105 = scmp.eq.s32.totalorder %s13, 7
    %p106 = scmp.ne.s32.totalorder %s101, %s103
    %p107 = scmp.eq.s32.totalorder %s13, 0
    %p108 = por %p106, %p107
    %p109 = scmp.ne.s32.totalorder %s101, %s103
    %p110 = scmp.eq.s32.totalorder %s18, 7
    %p111 = por %p109, %p110
    %p112 = scmp.ne.s32.totalorder %s103, %s104
    %p113 = scmp.eq.s32.totalorder %s18, 0
    %p114 = por %p112, %p113
    %p115 = scmp.ne.s32.totalorder %s103, %s104
    %p116 = scmp.eq.s32.totalorder %s19, 7
    %p117 = por %p115, %p116
    %p119 = scmp.ne.s32.totalorder %s104, %s118
    %p120 = scmp.eq.s32.totalorder %s19, 0
    %p121 = por %p119, %p120
    %s123 = sadd.s32 %s122, 1
    %p126 = scmp.eq.s32.totalorder %s13, 7
    %p127 = scmp.ne.s32.totalorder %s122, %s124
    %p128 = scmp.eq.s32.totalorder %s13, 0
    %p129 = por %p127, %p128
    %p130 = scmp.ne.s32.totalorder %s122, %s124
    %p131 = scmp.eq.s32.totalorder %s18, 7
    %p132 = por %p130, %p131
    %p133 = scmp.ne.s32.totalorder %s124, %s125
    %p134 = scmp.eq.s32.totalorder %s18, 0
    %p135 = por %p133, %p134
    %p136 = scmp.ne.s32.totalorder %s124, %s125
    %p137 = scmp.eq.s32.totalorder %s19, 7
    %p138 = por %p136, %p137
    %p140 = scmp.ne.s32.totalorder %s125, %s139
    %p141 = scmp.eq.s32.totalorder %s19, 0
    %p142 = por %p140, %p141
    %s144 = sadd.s32 %s143, 1
    %p147 = scmp.eq.s32.totalorder %s13, 7
    %p148 = scmp.ne.s32.totalorder %s143, %s145
    %p149 = scmp.eq.s32.totalorder %s13, 0
    %p150 = por %p148, %p149
    %p151 = scmp.ne.s32.totalorder %s143, %s145
    %p152 = scmp.eq.s32.totalorder %s18, 7
    %p153 = por %p151, %p152
    %p154 = scmp.ne.s32.totalorder %s145, %s146
    %p155 = scmp.eq.s32.totalorder %s18, 0
    %p156 = por %p154, %p155
    %p157 = scmp.ne.s32.totalorder %s145, %s146
    %p158 = scmp.eq.s32.totalorder %s19, 7
    %p159 = por %p157, %p158
    %p161 = scmp.ne.s32.totalorder %s146, %s160
    %p162 = scmp.eq.s32.totalorder %s19, 0
    %p163 = por %p161, %p162
    %s165 = sadd.s32 %s164, 1
    %p168 = scmp.eq.s32.totalorder %s13, 7
    %p169 = scmp.ne.s32.totalorder %s164, %s166
    %p170 = scmp.eq.s32.totalorder %s13, 0
    %p171 = por %p169, %p170
    %p172 = scmp.ne.s32.totalorder %s164, %s166
    %p173 = scmp.eq.s32.totalorder %s18, 7
    %p174 = por %p172, %p173
    %p175 = scmp.ne.s32.totalorder %s166, %s167
    %p176 = scmp.eq.s32.totalorder %s18, 0
    %p177 = por %p175, %p176
    %p178 = scmp.ne.s32.totalorder %s166, %s167
    %p179 = scmp.eq.s32.totalorder %s19, 7
    %p180 = por %p178, %p179
    %p182 = scmp.ne.s32.totalorder %s167, %s181
    %p183 = scmp.eq.s32.totalorder %s19, 0
    %p184 = por %p182, %p183
    %s185 = ssub.s32 %s20, %s32
    %s186 = ssub.s32 %s21, %s28
    %s187 = sor.u32 %s185, %s186
    %p188 = scmp.eq.s32.totalorder %s187, 0
    %s190 = sadd.s32 %s189, 1
    %s191 = scalar_select %p188, %s189, %s190
    %p194 = pneg %p188
    %p195 = scmp.eq.s32.totalorder %s13, 7
    %p196 = por %p194, %p195
    %p197 = scmp.ne.s32.totalorder %s189, %s192
    %p198 = scmp.eq.s32.totalorder %s13, 0
    %p199 = por %p197, %p198
    %p200 = scmp.ne.s32.totalorder %s189, %s192
    %p201 = scmp.eq.s32.totalorder %s18, 7
    %p202 = por %p200, %p201
    %p203 = scmp.ne.s32.totalorder %s192, %s193
    %p204 = scmp.eq.s32.totalorder %s18, 0
    %p205 = por %p203, %p204
    %p206 = scmp.ne.s32.totalorder %s192, %s193
    %p207 = scmp.eq.s32.totalorder %s19, 7
    %p208 = por %p206, %p207
    %p210 = scmp.ne.s32.totalorder %s193, %s209
    %p211 = scmp.eq.s32.totalorder %s19, 0
    %p212 = por %p210, %p211
    %p213 = scmp.le.s32.totalorder 1, %s13
    %p214 = scmp.lt.s32.totalorder %s13, 9
    %p215 = pnand %p213, %p214
    %p216 = pneg %p215
    // Predicated region
    $region9: #{tpu_custom_call.1} parent=5 // pred_check
      _
    $region10: #{tpu_custom_call.1} parent=5 // pred_check_branch
      %218 = sbr.rel (%p215) target = $region12
    $region11: #{tpu_custom_call.1} parent=5 // pred_region
      %s219 = ssub.s32 %s13, 1
      // Predicated region
      $region13: #{tpu_custom_call.1} parent=11 // pred_check
        %p220 = pneg %p72
      $region14: #{tpu_custom_call.1} parent=11 // pred_check_branch
        %222 = sbr.rel (%p220) target = $region16
      $region15: #{tpu_custom_call.1} parent=11 // pred_region
        _
      $region16: #{tpu_custom_call.1} parent=11 // pred_fallthru
        _
      // Predicated region
      $region17: #{tpu_custom_call.1} parent=11 // pred_check
        %p223 = pneg %p93
      $region18: #{tpu_custom_call.1} parent=11 // pred_check_branch
        %225 = sbr.rel (%p223) target = $region20
      $region19: #{tpu_custom_call.1} parent=11 // pred_region
        _
      $region20: #{tpu_custom_call.1} parent=11 // pred_fallthru
        _
      // Predicated region
      $region21: #{tpu_custom_call.1} parent=11 // pred_check
        %p226 = pneg %p114
      $region22: #{tpu_custom_call.1} parent=11 // pred_check_branch
        %228 = sbr.rel (%p226) target = $region24
      $region23: #{tpu_custom_call.1} parent=11 // pred_region
        _
      $region24: #{tpu_custom_call.1} parent=11 // pred_fallthru
        _
      // Predicated region
      $region25: #{tpu_custom_call.1} parent=11 // pred_check
        %p229 = pneg %p135
      $region26: #{tpu_custom_call.1} parent=11 // pred_check_branch
        %231 = sbr.rel (%p229) target = $region28
      $region27: #{tpu_custom_call.1} parent=11 // pred_region
        _
      $region28: #{tpu_custom_call.1} parent=11 // pred_fallthru
        _
      // Predicated region
      $region29: #{tpu_custom_call.1} parent=11 // pred_check
        %p232 = pneg %p156
      $region30: #{tpu_custom_call.1} parent=11 // pred_check_branch
        %234 = sbr.rel (%p232) target = $region32
      $region31: #{tpu_custom_call.1} parent=11 // pred_region
        _
      $region32: #{tpu_custom_call.1} parent=11 // pred_fallthru
        _
      // Predicated region
      $region33: #{tpu_custom_call.1} parent=11 // pred_check
        %p235 = pneg %p177
      $region34: #{tpu_custom_call.1} parent=11 // pred_check_branch
        %237 = sbr.rel (%p235) target = $region36
      $region35: #{tpu_custom_call.1} parent=11 // pred_region
        _
      $region36: #{tpu_custom_call.1} parent=11 // pred_fallthru
        _
    $region12: #{tpu_custom_call.1} parent=5 // pred_fallthru
      _
    %p238 = scmp.lt.s32.totalorder %s13, 8
    // Predicated region
    $region37: #{tpu_custom_call.1} parent=5 // pred_check
      %p239 = pneg %p238
    $region38: #{tpu_custom_call.1} parent=5 // pred_check_branch
      %241 = sbr.rel (%p239) target = $region40
    $region39: #{tpu_custom_call.1} parent=5 // pred_region
      // Predicated region
      $region41: #{tpu_custom_call.1} parent=39 // pred_check
        %p242 = pneg %p45
      $region42: #{tpu_custom_call.1} parent=39 // pred_check_branch
        %244 = sbr.rel (%p242) target = $region44
      $region43: #{tpu_custom_call.1} parent=39 // pred_region
        %p245 = scmp.lt.s32.totalorder %s20, 1
        %s246 = scalar_select %p245, %s20, 1
        %s247 = smul.addr %s246, 32
        %s248 = smul.addr %s247, 4
        %s249 = scalar_lea.vmem %s0, %s248
      $region44: #{tpu_custom_call.1} parent=39 // pred_fallthru
        _
    $region40: #{tpu_custom_call.1} parent=5 // pred_fallthru
      _
    %p250 = scmp.le.s32.totalorder 1, %s13
    %p251 = scmp.lt.s32.totalorder %s13, 9
    %p252 = pnand %p250, %p251
    %p253 = pneg %p252
    // Predicated region
    $region45: #{tpu_custom_call.1} parent=5 // pred_check
      _
    $region46: #{tpu_custom_call.1} parent=5 // pred_check_branch
      %255 = sbr.rel (%p252) target = $region48
    $region47: #{tpu_custom_call.1} parent=5 // pred_region
      %s256 = ssub.s32 %s13, 1
      %p257 = scmp.lt.s32.totalorder %s22, 1
      %s258 = scalar_select %p257, %s22, 1
      %s259 = smul.addr %s258, 32
      %s260 = smul.addr %s259, 4
      %s261 = scalar_lea.vmem %s0, %s260
      %p262 = pneg %p51
      %p263 = pneg %p48
      %p264 = pneg %p72
      %p265 = pneg %p69
      %p266 = pneg %p93
      %p267 = pneg %p90
      %p268 = pneg %p114
      %p269 = pneg %p111
      %p270 = pneg %p135
      %p271 = pneg %p132
      %p272 = pneg %p156
      %p273 = pneg %p153
      %p274 = pneg %p177
      %p275 = pneg %p174
      %p276 = pneg %p205
      %p277 = pneg %p202
      %s278 = smul.u32 4, %s23
      %p279 = scmp.lt.s32.totalorder %s22, 1
      %s280 = scalar_select %p279, %s22, 1
      %p281 = scmp.lt.s32.totalorder %s278, 15
      %s282 = scalar_select %p281, %s278, 15
      %s283 = smul.addr %s282, 2
      %s284 = smul.addr %s280, 32
      %s285 = sadd.s32 %s283, %s284
      %s286 = smul.addr %s285, 8
      %s287 = scalar_lea.vmem %s7, %s286
      %p288 = scmp.lt.s32.totalorder %s22, 1
      %s289 = scalar_select %p288, %s22, 1
      %s290 = smul.addr %s289, 32
      %s291 = smul.addr %s290, 4
      %s292 = scalar_lea.vmem %s0, %s291
      %s293 = smul.u32 4, %s23
      %p294 = scmp.lt.s32.totalorder %s22, 1
      %s295 = scalar_select %p294, %s22, 1
      %p296 = scmp.lt.s32.totalorder %s293, 15
      %s297 = scalar_select %p296, %s293, 15
      %s298 = smul.addr %s297, 2
      %s299 = smul.addr %s295, 32
      %s300 = sadd.s32 %s298, %s299
      %s301 = smul.addr %s300, 8
      %s302 = scalar_lea.vmem %s7, %s301
      %s303 = smul.u32 4, %s23
      %s305 = smul.u32 %s23, 4
      %p306 = scmp.eq.s32.totalorder %s23, 0
      // Predicated region
      $region49: #{tpu_custom_call.1} parent=47 // pred_check
        %p307 = pneg %p306
      $region50: #{tpu_custom_call.1} parent=47 // pred_check_branch
        %309 = sbr.rel (%p307) target = $region52
      $region51: #{tpu_custom_call.1} parent=47 // pred_region
        %vm310 = vcmask 27648
        %311 = vst.msk [vmem:[#allocation2] sm:$0xf] %vm310, 0
        %312 = vst.msk [vmem:[#allocation2 + $0x4] sm:$0xf] %vm310, 0
        %vm313 = vcmask 24576
        %314 = vst.msk [vmem:[#allocation2 + $0x8] sm:$0x1] %vm313, 0
        %315 = vst.msk [vmem:[#allocation2 + $0xc] sm:$0xf] %vm310, 0
        %316 = vst.msk [vmem:[#allocation2 + $0x10] sm:$0xf] %vm310, 0
        %317 = vst.msk [vmem:[#allocation2 + $0x14] sm:$0x1] %vm313, 0
        %s318 = scalar_lea.vmem [#allocation2], 216
        %319 = vst.msk [vmem:[%s318] sm:$0xf] %vm310, 0
        %320 = vst.msk [vmem:[%s318 + $0x4] sm:$0xf] %vm310, 0
        %321 = vst.msk [vmem:[%s318 + $0x8] sm:$0x1] %vm313, 0
        %322 = vst.msk [vmem:[%s318 + $0xc] sm:$0xf] %vm310, 0
        %323 = vst.msk [vmem:[%s318 + $0x10] sm:$0xf] %vm310, 0
        %324 = vst.msk [vmem:[%s318 + $0x14] sm:$0x1] %vm313, 0
        %vm325 = vcmask 24576
        %vm326 = vsmask.f32 256
        %vm327 = vmand %vm325, %vm326
        %v328 = vld [vmem:[#allocation2] sm:$0x1]
        %v329 = vsel %vm327, 0, %v328
        %330 = vst [vmem:[#allocation2] sm:$0x1] %v329
        %v331 = vld [vmem:[#allocation2 + $0xc] sm:$0x1]
        %v332 = vsel %vm327, 0, %v331
        %333 = vst [vmem:[#allocation2 + $0xc] sm:$0x1] %v332
        %v334 = vld [vmem:[#allocation2 + $0x18] sm:$0x1]
        %v335 = vsel %vm327, 0, %v334
        %336 = vst [vmem:[#allocation2 + $0x18] sm:$0x1] %v335
        %v337 = vld [vmem:[#allocation2 + $0x24] sm:$0x1]
        %v338 = vsel %vm327, 0, %v337
        %339 = vst [vmem:[#allocation2 + $0x24] sm:$0x1] %v338
        %v340 = vld [vmem:[#allocation2 + $0x30] sm:$0x1]
        %v341 = vsel %vm327, 0, %v340
        %342 = vst [vmem:[#allocation2 + $0x30] sm:$0x1] %v341
        %v343 = vld [vmem:[#allocation2 + $0x3c] sm:$0x1]
        %v344 = vsel %vm327, 0, %v343
        %345 = vst [vmem:[#allocation2 + $0x3c] sm:$0x1] %v344
        %v346 = vld [vmem:[#allocation2 + $0x48] sm:$0x1]
        %v347 = vsel %vm327, 0, %v346
        %348 = vst [vmem:[#allocation2 + $0x48] sm:$0x1] %v347
        %v349 = vld [vmem:[#allocation2 + $0x54] sm:$0x1]
        %v350 = vsel %vm327, 0, %v349
        %351 = vst [vmem:[#allocation2 + $0x54] sm:$0x1] %v350
        %v352 = vld [vmem:[#allocation2 + $0x60] sm:$0x1]
        %v353 = vsel %vm327, 0, %v352
        %354 = vst [vmem:[#allocation2 + $0x60] sm:$0x1] %v353
        %v355 = vld [vmem:[#allocation2 + $0x6c] sm:$0x1]
        %v356 = vsel %vm327, 0, %v355
        %357 = vst [vmem:[#allocation2 + $0x6c] sm:$0x1] %v356
        %v358 = vld [vmem:[#allocation2 + $0x78] sm:$0x1]
        %v359 = vsel %vm327, 0, %v358
        %360 = vst [vmem:[#allocation2 + $0x78] sm:$0x1] %v359
        %v361 = vld [vmem:[#allocation2 + $0x84] sm:$0x1]
        %v362 = vsel %vm327, 0, %v361
        %363 = vst [vmem:[#allocation2 + $0x84] sm:$0x1] %v362
        %v364 = vld [vmem:[#allocation2 + $0x90] sm:$0x1]
        %v365 = vsel %vm327, 0, %v364
        %366 = vst [vmem:[#allocation2 + $0x90] sm:$0x1] %v365
        %v367 = vld [vmem:[#allocation2 + $0x9c] sm:$0x1]
        %v368 = vsel %vm327, 0, %v367
        %369 = vst [vmem:[#allocation2 + $0x9c] sm:$0x1] %v368
        %v370 = vld [vmem:[#allocation2 + $0xa8] sm:$0x1]
        %v371 = vsel %vm327, 0, %v370
        %372 = vst [vmem:[#allocation2 + $0xa8] sm:$0x1] %v371
        %v373 = vld [vmem:[#allocation2 + $0xb4] sm:$0x1]
        %v374 = vsel %vm327, 0, %v373
        %375 = vst [vmem:[#allocation2 + $0xb4] sm:$0x1] %v374
        %v376 = vld [vmem:[#allocation2 + $0xc0] sm:$0x1]
        %v377 = vsel %vm327, 0, %v376
        %378 = vst [vmem:[#allocation2 + $0xc0] sm:$0x1] %v377
        %v379 = vld [vmem:[#allocation2 + $0xcc] sm:$0x1]
        %v380 = vsel %vm327, 0, %v379
        %381 = vst [vmem:[#allocation2 + $0xcc] sm:$0x1] %v380
        %v382 = vld [vmem:[#allocation2 + $0xd8] sm:$0x1]
        %v383 = vsel %vm327, 0, %v382
        %384 = vst [vmem:[#allocation2 + $0xd8] sm:$0x1] %v383
        %v385 = vld [vmem:[#allocation2 + $0xe4] sm:$0x1]
        %v386 = vsel %vm327, 0, %v385
        %387 = vst [vmem:[#allocation2 + $0xe4] sm:$0x1] %v386
        %vm388 = vsmask.f32 7938
        %vm389 = vmand %vm325, %vm388
        %v390 = vld [vmem:[#allocation2 + $0x8] sm:$0x1]
        %v391 = vsel %vm389, 0, %v390
        %392 = vst [vmem:[#allocation2 + $0x8] sm:$0x1] %v391
        %v393 = vld [vmem:[#allocation2 + $0x14] sm:$0x1]
        %v394 = vsel %vm389, 0, %v393
        %395 = vst [vmem:[#allocation2 + $0x14] sm:$0x1] %v394
        %v396 = vld [vmem:[#allocation2 + $0x20] sm:$0x1]
        %v397 = vsel %vm389, 0, %v396
        %398 = vst [vmem:[#allocation2 + $0x20] sm:$0x1] %v397
        %v399 = vld [vmem:[#allocation2 + $0x2c] sm:$0x1]
        %v400 = vsel %vm389, 0, %v399
        %401 = vst [vmem:[#allocation2 + $0x2c] sm:$0x1] %v400
        %v402 = vld [vmem:[#allocation2 + $0x38] sm:$0x1]
        %v403 = vsel %vm389, 0, %v402
        %404 = vst [vmem:[#allocation2 + $0x38] sm:$0x1] %v403
        %v405 = vld [vmem:[#allocation2 + $0x44] sm:$0x1]
        %v406 = vsel %vm389, 0, %v405
        %407 = vst [vmem:[#allocation2 + $0x44] sm:$0x1] %v406
        %v408 = vld [vmem:[#allocation2 + $0x50] sm:$0x1]
        %v409 = vsel %vm389, 0, %v408
        %410 = vst [vmem:[#allocation2 + $0x50] sm:$0x1] %v409
        %v411 = vld [vmem:[#allocation2 + $0x5c] sm:$0x1]
        %v412 = vsel %vm389, 0, %v411
        %413 = vst [vmem:[#allocation2 + $0x5c] sm:$0x1] %v412
        %v414 = vld [vmem:[#allocation2 + $0x68] sm:$0x1]
        %v415 = vsel %vm389, 0, %v414
        %416 = vst [vmem:[#allocation2 + $0x68] sm:$0x1] %v415
        %v417 = vld [vmem:[#allocation2 + $0x74] sm:$0x1]
        %v418 = vsel %vm389, 0, %v417
        %419 = vst [vmem:[#allocation2 + $0x74] sm:$0x1] %v418
        %v420 = vld [vmem:[#allocation2 + $0x80] sm:$0x1]
        %v421 = vsel %vm389, 0, %v420
        %422 = vst [vmem:[#allocation2 + $0x80] sm:$0x1] %v421
        %v423 = vld [vmem:[#allocation2 + $0x8c] sm:$0x1]
        %v424 = vsel %vm389, 0, %v423
        %425 = vst [vmem:[#allocation2 + $0x8c] sm:$0x1] %v424
        %v426 = vld [vmem:[#allocation2 + $0x98] sm:$0x1]
        %v427 = vsel %vm389, 0, %v426
        %428 = vst [vmem:[#allocation2 + $0x98] sm:$0x1] %v427
        %v429 = vld [vmem:[#allocation2 + $0xa4] sm:$0x1]
        %v430 = vsel %vm389, 0, %v429
        %431 = vst [vmem:[#allocation2 + $0xa4] sm:$0x1] %v430
        %v432 = vld [vmem:[#allocation2 + $0xb0] sm:$0x1]
        %v433 = vsel %vm389, 0, %v432
        %434 = vst [vmem:[#allocation2 + $0xb0] sm:$0x1] %v433
        %v435 = vld [vmem:[#allocation2 + $0xbc] sm:$0x1]
        %v436 = vsel %vm389, 0, %v435
        %437 = vst [vmem:[#allocation2 + $0xbc] sm:$0x1] %v436
        %v438 = vld [vmem:[#allocation2 + $0xc8] sm:$0x1]
        %v439 = vsel %vm389, 0, %v438
        %440 = vst [vmem:[#allocation2 + $0xc8] sm:$0x1] %v439
        %v441 = vld [vmem:[#allocation2 + $0xd4] sm:$0x1]
        %v442 = vsel %vm389, 0, %v441
        %443 = vst [vmem:[#allocation2 + $0xd4] sm:$0x1] %v442
        %v444 = vld [vmem:[#allocation2 + $0xe0] sm:$0x1]
        %v445 = vsel %vm389, 0, %v444
        %446 = vst [vmem:[#allocation2 + $0xe0] sm:$0x1] %v445
        %v447 = vld [vmem:[#allocation2 + $0xec] sm:$0x1]
        %v448 = vsel %vm389, 0, %v447
        %449 = vst [vmem:[#allocation2 + $0xec] sm:$0x1] %v448
        %v450 = vld [vmem:[%s292] sm:$0xf]
        %v451 = vld [vmem:[%s292 + $0x4] sm:$0xf]
        %v452 = vld [vmem:[%s292 + $0x8] sm:$0xf]
        %v453 = vld [vmem:[%s292 + $0xc] sm:$0xf]
        %v454 = vld [vmem:[%s292 + $0x10] sm:$0xf]
        %v455 = vld [vmem:[%s292 + $0x14] sm:$0xf]
        %v456 = vld [vmem:[%s292 + $0x18] sm:$0xf]
        %v457 = vld [vmem:[%s292 + $0x1c] sm:$0xf]
        %v458 = vld [vmem:[%s292 + $0x20] sm:$0xf]
        %v459 = vld [vmem:[%s292 + $0x24] sm:$0xf]
        %v460 = vld [vmem:[%s292 + $0x28] sm:$0xf]
        %v461 = vld [vmem:[%s292 + $0x2c] sm:$0xf]
        %v462 = vld [vmem:[%s292 + $0x30] sm:$0xf]
        %v463 = vld [vmem:[%s292 + $0x34] sm:$0xf]
        %v464 = vld [vmem:[%s292 + $0x38] sm:$0xf]
        %v465 = vld [vmem:[%s292 + $0x3c] sm:$0xf]
        %v466 = vld [vmem:[%s292 + $0x40] sm:$0xf]
        %v467 = vld [vmem:[%s292 + $0x44] sm:$0xf]
        %v468 = vld [vmem:[%s292 + $0x48] sm:$0xf]
        %v469 = vld [vmem:[%s292 + $0x4c] sm:$0xf]
        %v470 = vld [vmem:[%s292 + $0x50] sm:$0xf]
        %v471 = vld [vmem:[%s292 + $0x54] sm:$0xf]
        %v472 = vld [vmem:[%s292 + $0x58] sm:$0xf]
        %v473 = vld [vmem:[%s292 + $0x5c] sm:$0xf]
        %v474 = vld [vmem:[%s292 + $0x60] sm:$0xf]
        %v475 = vld [vmem:[%s292 + $0x64] sm:$0xf]
        %v476 = vld [vmem:[%s292 + $0x68] sm:$0xf]
        %v477 = vld [vmem:[%s292 + $0x6c] sm:$0xf]
        %v478 = vld [vmem:[%s292 + $0x70] sm:$0xf]
        %v479 = vld [vmem:[%s292 + $0x74] sm:$0xf]
        %v480 = vld [vmem:[%s292 + $0x78] sm:$0xf]
        %v481 = vld [vmem:[%s292 + $0x7c] sm:$0xf]
        %vm482 = vsmask.f32 4368
        %vm483 = vmor %vm326, %vm482
        %v485 = vshrl.u32 %v450, 16
        %v487 = vrot.slane %v485, 7
        %v488 = vshll.u32 %v450, 16
        %v490 = vor.u32 %v487, %v488
        %v491 = vrot.slane %v487, 4
        %v493 = vshrl.u32 %v451, 16
        %v495 = vrot.slane %v493, 7
        %v496 = vshll.u32 %v451, 16
        %v498 = vor.u32 %v495, %v496
        %v499 = vsel %vm483, %v491, %v498
        %v500 = vrot.slane %v495, 4
        %v502 = vshrl.u32 %v452, 16
        %v504 = vrot.slane %v502, 7
        %v505 = vshll.u32 %v452, 16
        %v507 = vor.u32 %v504, %v505
        %v508 = vrot.slane %v504, 4
        %v510 = vshrl.u32 %v453, 16
        %v512 = vrot.slane %v510, 7
        %v513 = vshll.u32 %v453, 16
        %v515 = vor.u32 %v512, %v513
        %v516 = vsel %vm483, %v508, %v515
        %v517 = vrot.slane %v512, 4
        %v519 = vshrl.u32 %v454, 16
        %v521 = vrot.slane %v519, 7
        %v522 = vshll.u32 %v454, 16
        %v524 = vor.u32 %v521, %v522
        %v525 = vrot.slane %v521, 4
        %v527 = vshrl.u32 %v455, 16
        %v529 = vrot.slane %v527, 7
        %v530 = vshll.u32 %v455, 16
        %v532 = vor.u32 %v529, %v530
        %v533 = vsel %vm483, %v525, %v532
        %v534 = vrot.slane %v529, 4
        %v536 = vshrl.u32 %v456, 16
        %v538 = vrot.slane %v536, 7
        %v539 = vshll.u32 %v456, 16
        %v541 = vor.u32 %v538, %v539
        %v542 = vrot.slane %v538, 4
        %v544 = vshrl.u32 %v457, 16
        %v546 = vrot.slane %v544, 7
        %v547 = vshll.u32 %v457, 16
        %v549 = vor.u32 %v546, %v547
        %v550 = vsel %vm483, %v542, %v549
        %v551 = vrot.slane %v546, 4
        %v553 = vshrl.u32 %v458, 16
        %v555 = vrot.slane %v553, 7
        %v556 = vshll.u32 %v458, 16
        %v558 = vor.u32 %v555, %v556
        %v559 = vrot.slane %v555, 4
        %v561 = vshrl.u32 %v459, 16
        %v563 = vrot.slane %v561, 7
        %v564 = vshll.u32 %v459, 16
        %v566 = vor.u32 %v563, %v564
        %v567 = vsel %vm483, %v559, %v566
        %v568 = vrot.slane %v563, 4
        %v570 = vshrl.u32 %v460, 16
        %v572 = vrot.slane %v570, 7
        %v573 = vshll.u32 %v460, 16
        %v575 = vor.u32 %v572, %v573
        %v576 = vrot.slane %v572, 4
        %v578 = vshrl.u32 %v461, 16
        %v580 = vrot.slane %v578, 7
        %v581 = vshll.u32 %v461, 16
        %v583 = vor.u32 %v580, %v581
        %v584 = vsel %vm483, %v576, %v583
        %v585 = vrot.slane %v580, 4
        %v587 = vshrl.u32 %v462, 16
        %v589 = vrot.slane %v587, 7
        %v590 = vshll.u32 %v462, 16
        %v592 = vor.u32 %v589, %v590
        %v593 = vrot.slane %v589, 4
        %v595 = vshrl.u32 %v463, 16
        %v597 = vrot.slane %v595, 7
        %v598 = vshll.u32 %v463, 16
        %v600 = vor.u32 %v597, %v598
        %v601 = vsel %vm483, %v593, %v600
        %v602 = vrot.slane %v597, 4
        %v604 = vshrl.u32 %v464, 16
        %v606 = vrot.slane %v604, 7
        %v607 = vshll.u32 %v464, 16
        %v609 = vor.u32 %v606, %v607
        %v610 = vrot.slane %v606, 4
        %v612 = vshrl.u32 %v465, 16
        %v614 = vrot.slane %v612, 7
        %v615 = vshll.u32 %v465, 16
        %v617 = vor.u32 %v614, %v615
        %v618 = vsel %vm483, %v610, %v617
        %v619 = vrot.slane %v614, 4
        %v621 = vshrl.u32 %v466, 16
        %v623 = vrot.slane %v621, 7
        %v624 = vshll.u32 %v466, 16
        %v626 = vor.u32 %v623, %v624
        %v627 = vrot.slane %v623, 4
        %v629 = vshrl.u32 %v467, 16
        %v631 = vrot.slane %v629, 7
        %v632 = vshll.u32 %v467, 16
        %v634 = vor.u32 %v631, %v632
        %v635 = vsel %vm483, %v627, %v634
        %v636 = vrot.slane %v631, 4
        %v638 = vshrl.u32 %v468, 16
        %v640 = vrot.slane %v638, 7
        %v641 = vshll.u32 %v468, 16
        %v643 = vor.u32 %v640, %v641
        %v644 = vrot.slane %v640, 4
        %v646 = vshrl.u32 %v469, 16
        %v648 = vrot.slane %v646, 7
        %v649 = vshll.u32 %v469, 16
        %v651 = vor.u32 %v648, %v649
        %v652 = vsel %vm483, %v644, %v651
        %v653 = vrot.slane %v648, 4
        %v655 = vshrl.u32 %v470, 16
        %v657 = vrot.slane %v655, 7
        %v658 = vshll.u32 %v470, 16
        %v660 = vor.u32 %v657, %v658
        %v661 = vrot.slane %v657, 4
        %v663 = vshrl.u32 %v471, 16
        %v665 = vrot.slane %v663, 7
        %v666 = vshll.u32 %v471, 16
        %v668 = vor.u32 %v665, %v666
        %v669 = vsel %vm483, %v661, %v668
        %v670 = vrot.slane %v665, 4
        %v672 = vshrl.u32 %v472, 16
        %v674 = vrot.slane %v672, 7
        %v675 = vshll.u32 %v472, 16
        %v677 = vor.u32 %v674, %v675
        %v678 = vrot.slane %v674, 4
        %v680 = vshrl.u32 %v473, 16
        %v682 = vrot.slane %v680, 7
        %v683 = vshll.u32 %v473, 16
        %v685 = vor.u32 %v682, %v683
        %v686 = vsel %vm483, %v678, %v685
        %v687 = vrot.slane %v682, 4
        %v689 = vshrl.u32 %v474, 16
        %v691 = vrot.slane %v689, 7
        %v692 = vshll.u32 %v474, 16
        %v694 = vor.u32 %v691, %v692
        %v695 = vrot.slane %v691, 4
        %v697 = vshrl.u32 %v475, 16
        %v699 = vrot.slane %v697, 7
        %v700 = vshll.u32 %v475, 16
        %v702 = vor.u32 %v699, %v700
        %v703 = vsel %vm483, %v695, %v702
        %v704 = vrot.slane %v699, 4
        %v706 = vshrl.u32 %v476, 16
        %v708 = vrot.slane %v706, 7
        %v709 = vshll.u32 %v476, 16
        %v711 = vor.u32 %v708, %v709
        %v712 = vrot.slane %v708, 4
        %v714 = vshrl.u32 %v477, 16
        %v716 = vrot.slane %v714, 7
        %v717 = vshll.u32 %v477, 16
        %v719 = vor.u32 %v716, %v717
        %v720 = vsel %vm483, %v712, %v719
        %v721 = vrot.slane %v716, 4
        %v723 = vshrl.u32 %v478, 16
        %v725 = vrot.slane %v723, 7
        %v726 = vshll.u32 %v478, 16
        %v728 = vor.u32 %v725, %v726
        %v729 = vrot.slane %v725, 4
        %v731 = vshrl.u32 %v479, 16
        %v733 = vrot.slane %v731, 7
        %v734 = vshll.u32 %v479, 16
        %v736 = vor.u32 %v733, %v734
        %v737 = vsel %vm483, %v729, %v736
        %v738 = vrot.slane %v733, 4
        %v740 = vshrl.u32 %v480, 16
        %v742 = vrot.slane %v740, 7
        %v743 = vshll.u32 %v480, 16
        %v745 = vor.u32 %v742, %v743
        %v746 = vrot.slane %v742, 4
        %v748 = vshrl.u32 %v481, 16
        %v750 = vrot.slane %v748, 7
        %v751 = vshll.u32 %v481, 16
        %v753 = vor.u32 %v750, %v751
        %v754 = vsel %vm483, %v746, %v753
        %v755 = vrot.slane %v750, 4
        %s804 = scalar_lea.vmem [#allocation2], 24
        %vm805 = vcmask 27648
        %vm806 = vmand %vm805, %vm388
        %v807 = vld [vmem:[%s804] sm:$0xf]
        %v808 = vsel %vm806, %v490, %v807
        %809 = vst [vmem:[%s804] sm:$0xf] %v808
        %810 = vst.msk [vmem:[%s804 + $0x4] sm:$0xf] %vm310, %v499
        %v811 = vld [vmem:[%s804 + $0x8] sm:$0x1]
        %v812 = vsel %vm327, %v500, %v811
        %813 = vst [vmem:[%s804 + $0x8] sm:$0x1] %v812
        %v814 = vld [vmem:[%s804 + $0xc] sm:$0xf]
        %v815 = vsel %vm806, %v507, %v814
        %816 = vst [vmem:[%s804 + $0xc] sm:$0xf] %v815
        %817 = vst.msk [vmem:[%s804 + $0x10] sm:$0xf] %vm310, %v516
        %v818 = vld [vmem:[%s804 + $0x14] sm:$0x1]
        %v819 = vsel %vm327, %v517, %v818
        %820 = vst [vmem:[%s804 + $0x14] sm:$0x1] %v819
        %v821 = vld [vmem:[%s804 + $0x18] sm:$0xf]
        %v822 = vsel %vm806, %v524, %v821
        %823 = vst [vmem:[%s804 + $0x18] sm:$0xf] %v822
        %824 = vst.msk [vmem:[%s804 + $0x1c] sm:$0xf] %vm310, %v533
        %v825 = vld [vmem:[%s804 + $0x20] sm:$0x1]
        %v826 = vsel %vm327, %v534, %v825
        %827 = vst [vmem:[%s804 + $0x20] sm:$0x1] %v826
        %v828 = vld [vmem:[%s804 + $0x24] sm:$0xf]
        %v829 = vsel %vm806, %v541, %v828
        %830 = vst [vmem:[%s804 + $0x24] sm:$0xf] %v829
        %831 = vst.msk [vmem:[%s804 + $0x28] sm:$0xf] %vm310, %v550
        %v832 = vld [vmem:[%s804 + $0x2c] sm:$0x1]
        %v833 = vsel %vm327, %v551, %v832
        %834 = vst [vmem:[%s804 + $0x2c] sm:$0x1] %v833
        %v835 = vld [vmem:[%s804 + $0x30] sm:$0xf]
        %v836 = vsel %vm806, %v558, %v835
        %837 = vst [vmem:[%s804 + $0x30] sm:$0xf] %v836
        %838 = vst.msk [vmem:[%s804 + $0x34] sm:$0xf] %vm310, %v567
        %v839 = vld [vmem:[%s804 + $0x38] sm:$0x1]
        %v840 = vsel %vm327, %v568, %v839
        %841 = vst [vmem:[%s804 + $0x38] sm:$0x1] %v840
        %v842 = vld [vmem:[%s804 + $0x3c] sm:$0xf]
        %v843 = vsel %vm806, %v575, %v842
        %844 = vst [vmem:[%s804 + $0x3c] sm:$0xf] %v843
        %845 = vst.msk [vmem:[%s804 + $0x40] sm:$0xf] %vm310, %v584
        %v846 = vld [vmem:[%s804 + $0x44] sm:$0x1]
        %v847 = vsel %vm327, %v585, %v846
        %848 = vst [vmem:[%s804 + $0x44] sm:$0x1] %v847
        %v849 = vld [vmem:[%s804 + $0x48] sm:$0xf]
        %v850 = vsel %vm806, %v592, %v849
        %851 = vst [vmem:[%s804 + $0x48] sm:$0xf] %v850
        %852 = vst.msk [vmem:[%s804 + $0x4c] sm:$0xf] %vm310, %v601
        %v853 = vld [vmem:[%s804 + $0x50] sm:$0x1]
        %v854 = vsel %vm327, %v602, %v853
        %855 = vst [vmem:[%s804 + $0x50] sm:$0x1] %v854
        %v856 = vld [vmem:[%s804 + $0x54] sm:$0xf]
        %v857 = vsel %vm806, %v609, %v856
        %858 = vst [vmem:[%s804 + $0x54] sm:$0xf] %v857
        %859 = vst.msk [vmem:[%s804 + $0x58] sm:$0xf] %vm310, %v618
        %v860 = vld [vmem:[%s804 + $0x5c] sm:$0x1]
        %v861 = vsel %vm327, %v619, %v860
        %862 = vst [vmem:[%s804 + $0x5c] sm:$0x1] %v861
        %v863 = vld [vmem:[%s804 + $0x60] sm:$0xf]
        %v864 = vsel %vm806, %v626, %v863
        %865 = vst [vmem:[%s804 + $0x60] sm:$0xf] %v864
        %866 = vst.msk [vmem:[%s804 + $0x64] sm:$0xf] %vm310, %v635
        %v867 = vld [vmem:[%s804 + $0x68] sm:$0x1]
        %v868 = vsel %vm327, %v636, %v867
        %869 = vst [vmem:[%s804 + $0x68] sm:$0x1] %v868
        %v870 = vld [vmem:[%s804 + $0x6c] sm:$0xf]
        %v871 = vsel %vm806, %v643, %v870
        %872 = vst [vmem:[%s804 + $0x6c] sm:$0xf] %v871
        %873 = vst.msk [vmem:[%s804 + $0x70] sm:$0xf] %vm310, %v652
        %v874 = vld [vmem:[%s804 + $0x74] sm:$0x1]
        %v875 = vsel %vm327, %v653, %v874
        %876 = vst [vmem:[%s804 + $0x74] sm:$0x1] %v875
        %v877 = vld [vmem:[%s804 + $0x78] sm:$0xf]
        %v878 = vsel %vm806, %v660, %v877
        %879 = vst [vmem:[%s804 + $0x78] sm:$0xf] %v878
        %880 = vst.msk [vmem:[%s804 + $0x7c] sm:$0xf] %vm310, %v669
        %v881 = vld [vmem:[%s804 + $0x80] sm:$0x1]
        %v882 = vsel %vm327, %v670, %v881
        %883 = vst [vmem:[%s804 + $0x80] sm:$0x1] %v882
        %v884 = vld [vmem:[%s804 + $0x84] sm:$0xf]
        %v885 = vsel %vm806, %v677, %v884
        %886 = vst [vmem:[%s804 + $0x84] sm:$0xf] %v885
        %887 = vst.msk [vmem:[%s804 + $0x88] sm:$0xf] %vm310, %v686
        %v888 = vld [vmem:[%s804 + $0x8c] sm:$0x1]
        %v889 = vsel %vm327, %v687, %v888
        %890 = vst [vmem:[%s804 + $0x8c] sm:$0x1] %v889
        %v891 = vld [vmem:[%s804 + $0x90] sm:$0xf]
        %v892 = vsel %vm806, %v694, %v891
        %893 = vst [vmem:[%s804 + $0x90] sm:$0xf] %v892
        %894 = vst.msk [vmem:[%s804 + $0x94] sm:$0xf] %vm310, %v703
        %v895 = vld [vmem:[%s804 + $0x98] sm:$0x1]
        %v896 = vsel %vm327, %v704, %v895
        %897 = vst [vmem:[%s804 + $0x98] sm:$0x1] %v896
        %v898 = vld [vmem:[%s804 + $0x9c] sm:$0xf]
        %v899 = vsel %vm806, %v711, %v898
        %900 = vst [vmem:[%s804 + $0x9c] sm:$0xf] %v899
        %901 = vst.msk [vmem:[%s804 + $0xa0] sm:$0xf] %vm310, %v720
        %v902 = vld [vmem:[%s804 + $0xa4] sm:$0x1]
        %v903 = vsel %vm327, %v721, %v902
        %904 = vst [vmem:[%s804 + $0xa4] sm:$0x1] %v903
        %v905 = vld [vmem:[%s804 + $0xa8] sm:$0xf]
        %v906 = vsel %vm806, %v728, %v905
        %907 = vst [vmem:[%s804 + $0xa8] sm:$0xf] %v906
        %908 = vst.msk [vmem:[%s804 + $0xac] sm:$0xf] %vm310, %v737
        %v909 = vld [vmem:[%s804 + $0xb0] sm:$0x1]
        %v910 = vsel %vm327, %v738, %v909
        %911 = vst [vmem:[%s804 + $0xb0] sm:$0x1] %v910
        %v912 = vld [vmem:[%s804 + $0xb4] sm:$0xf]
        %v913 = vsel %vm806, %v745, %v912
        %914 = vst [vmem:[%s804 + $0xb4] sm:$0xf] %v913
        %915 = vst.msk [vmem:[%s804 + $0xb8] sm:$0xf] %vm310, %v754
        %v916 = vld [vmem:[%s804 + $0xbc] sm:$0x1]
        %v917 = vsel %vm327, %v755, %v916
        %918 = vst [vmem:[%s804 + $0xbc] sm:$0x1] %v917
      $region52: #{tpu_custom_call.1} parent=47 // pred_fallthru
        _
      %s919 = smul.u32 %s305, 3
      %s920 = smul.addr %s919, 4
      %s921 = scalar_lea.vmem [#allocation2], %s920
      %v922 = vld [vmem:[%s921] sm:$0xf]
      %v923 = vld [vmem:[%s921 + $0x4] sm:$0xf]
      %v924 = vld [vmem:[%s921 + $0x8] sm:$0x1]
      %v925 = vld [vmem:[%s921 + $0xc] sm:$0xf]
      %v926 = vld [vmem:[%s921 + $0x10] sm:$0xf]
      %v927 = vld [vmem:[%s921 + $0x14] sm:$0x1]
      %v928 = vld [vmem:[%s921 + $0x18] sm:$0xf]
      %v929 = vld [vmem:[%s921 + $0x1c] sm:$0xf]
      %v930 = vld [vmem:[%s921 + $0x20] sm:$0x1]
      %v931 = vld [vmem:[%s921 + $0x24] sm:$0xf]
      %v932 = vld [vmem:[%s921 + $0x28] sm:$0xf]
      %v933 = vld [vmem:[%s921 + $0x2c] sm:$0x1]
      %v934 = vld [vmem:[%s921 + $0x30] sm:$0xf]
      %v935 = vld [vmem:[%s921 + $0x34] sm:$0xf]
      %v936 = vld [vmem:[%s921 + $0x38] sm:$0x1]
      %v937 = vld [vmem:[%s921 + $0x3c] sm:$0xf]
      %v938 = vld [vmem:[%s921 + $0x40] sm:$0xf]
      %v939 = vld [vmem:[%s921 + $0x44] sm:$0x1]
      %v940 = vld [vmem:[%s921 + $0x48] sm:$0xf]
      %v941 = vld [vmem:[%s921 + $0x4c] sm:$0xf]
      %v942 = vld [vmem:[%s921 + $0x50] sm:$0x1]
      %v943 = vld [vmem:[%s921 + $0x54] sm:$0xf]
      %v944 = vld [vmem:[%s921 + $0x58] sm:$0xf]
      %v945 = vld [vmem:[%s921 + $0x5c] sm:$0x1]
      %v958 = vunpack.c.l.b16 %v922
      %v959 = vunpack.c.l.b16 %v923
      %v960 = vunpack.c.l.b16 %v925
      %v961 = vunpack.c.l.b16 %v926
      %v962 = vunpack.c.l.b16 %v928
      %v963 = vunpack.c.l.b16 %v929
      %v964 = vunpack.c.l.b16 %v931
      %v965 = vunpack.c.l.b16 %v932
      %v966 = vunpack.c.l.b16 %v934
      %v967 = vunpack.c.l.b16 %v935
      %v968 = vunpack.c.l.b16 %v937
      %v969 = vunpack.c.l.b16 %v938
      %v970 = vpack.c.b16 %v959, %v958
      %v971 = vpack.c.b16 %v961, %v960
      %v972 = vpack.c.b16 %v963, %v962
      %v973 = vpack.c.b16 %v965, %v964
      %v974 = vpack.c.b16 %v967, %v966
      %v975 = vpack.c.b16 %v969, %v968
      %v982 = vunpack.c.l.b16 %v924
      %v983 = vunpack.c.l.b16 %v927
      %v984 = vunpack.c.l.b16 %v930
      %v985 = vunpack.c.l.b16 %v933
      %v986 = vunpack.c.l.b16 %v936
      %v987 = vunpack.c.l.b16 %v939
      %v988 = vpack.c.b16 %v982, %v982
      %v989 = vpack.c.b16 %v983, %v983
      %v990 = vpack.c.b16 %v984, %v984
      %v991 = vpack.c.b16 %v985, %v985
      %v992 = vpack.c.b16 %v986, %v986
      %v993 = vpack.c.b16 %v987, %v987
      %vm994 = vsmask.f32 7424
      %v996 = vshrl.u32 %v970, 16
      %v998 = vshll.u32 %v970, 16
      %v1000 = vrot.slane %v998, 1
      %v1001 = vor.u32 %v996, %v1000
      %v1003 = vshll.u32 %v988, 16
      %v1005 = vrot.slane %v1003, 1
      %v1006 = vsel %vm994, %v1001, %v1005
      %v1008 = vshrl.u32 %v971, 16
      %v1010 = vshll.u32 %v971, 16
      %v1012 = vrot.slane %v1010, 1
      %v1013 = vor.u32 %v1008, %v1012
      %v1015 = vshll.u32 %v989, 16
      %v1017 = vrot.slane %v1015, 1
      %v1018 = vsel %vm994, %v1013, %v1017
      %v1020 = vshrl.u32 %v972, 16
      %v1022 = vshll.u32 %v972, 16
      %v1024 = vrot.slane %v1022, 1
      %v1025 = vor.u32 %v1020, %v1024
      %v1027 = vshll.u32 %v990, 16
      %v1029 = vrot.slane %v1027, 1
      %v1030 = vsel %vm994, %v1025, %v1029
      %v1032 = vshrl.u32 %v973, 16
      %v1034 = vshll.u32 %v973, 16
      %v1036 = vrot.slane %v1034, 1
      %v1037 = vor.u32 %v1032, %v1036
      %v1039 = vshll.u32 %v991, 16
      %v1041 = vrot.slane %v1039, 1
      %v1042 = vsel %vm994, %v1037, %v1041
      %v1044 = vshrl.u32 %v974, 16
      %v1046 = vshll.u32 %v974, 16
      %v1048 = vrot.slane %v1046, 1
      %v1049 = vor.u32 %v1044, %v1048
      %v1051 = vshll.u32 %v992, 16
      %v1053 = vrot.slane %v1051, 1
      %v1054 = vsel %vm994, %v1049, %v1053
      %v1056 = vshrl.u32 %v975, 16
      %v1058 = vshll.u32 %v975, 16
      %v1060 = vrot.slane %v1058, 1
      %v1061 = vor.u32 %v1056, %v1060
      %v1063 = vshll.u32 %v993, 16
      %v1065 = vrot.slane %v1063, 1
      %v1066 = vsel %vm994, %v1061, %v1065
      %1067 = vrot.lane.b32.xlu0 %v1006, 4
      %v1068 = vpop.permute.xlu0 %1067
      %1069 = vrot.lane.b32.xlu0 %v1018, 4
      %v1070 = vpop.permute.xlu0 %1069
      %1071 = vrot.lane.b32.xlu0 %v1030, 4
      %v1072 = vpop.permute.xlu0 %1071
      %1073 = vrot.lane.b32.xlu0 %v1042, 4
      %v1074 = vpop.permute.xlu0 %1073
      %1075 = vrot.lane.b32.xlu0 %v1054, 4
      %v1076 = vpop.permute.xlu0 %1075
      %1077 = vrot.lane.b32.xlu0 %v1066, 4
      %v1078 = vpop.permute.xlu0 %1077
      %vm1079 = vcmask 1046528
      %v1080 = vrot.slane %v970, 1
      %v1081 = vrot.slane %v988, 1
      %v1082 = vsel %vm1079, %v1080, %v1081
      %v1083 = vrot.slane %v971, 1
      %v1084 = vrot.slane %v989, 1
      %v1085 = vsel %vm1079, %v1083, %v1084
      %v1086 = vrot.slane %v972, 1
      %v1087 = vrot.slane %v990, 1
      %v1088 = vsel %vm1079, %v1086, %v1087
      %v1089 = vrot.slane %v973, 1
      %v1090 = vrot.slane %v991, 1
      %v1091 = vsel %vm1079, %v1089, %v1090
      %v1092 = vrot.slane %v974, 1
      %v1093 = vrot.slane %v992, 1
      %v1094 = vsel %vm1079, %v1092, %v1093
      %v1095 = vrot.slane %v975, 1
      %v1096 = vrot.slane %v993, 1
      %v1097 = vsel %vm1079, %v1095, %v1096
      %1098 = vrot.lane.b32.xlu0 %v1082, 8
      %v1099 = vpop.permute.xlu0 %1098
      %1100 = vrot.lane.b32.xlu0 %v1085, 8
      %v1101 = vpop.permute.xlu0 %1100
      %1102 = vrot.lane.b32.xlu0 %v1088, 8
      %v1103 = vpop.permute.xlu0 %1102
      %1104 = vrot.lane.b32.xlu0 %v1091, 8
      %v1105 = vpop.permute.xlu0 %1104
      %1106 = vrot.lane.b32.xlu0 %v1094, 8
      %v1107 = vpop.permute.xlu0 %1106
      %1108 = vrot.lane.b32.xlu0 %v1097, 8
      %v1109 = vpop.permute.xlu0 %1108
      %v1112 = vunpack.c.l.b16 %v940
      %v1113 = vunpack.c.l.b16 %v941
      %v1114 = vpack.c.b16 %v1113, %v1112
      %1115 = vrot.lane.b32.xlu0 %v971, 12
      %v1116 = vpop.permute.xlu0 %1115
      %1117 = vrot.lane.b32.xlu0 %v972, 12
      %v1118 = vpop.permute.xlu0 %1117
      %1119 = vrot.lane.b32.xlu0 %v973, 12
      %v1120 = vpop.permute.xlu0 %1119
      %1121 = vrot.lane.b32.xlu0 %v974, 12
      %v1122 = vpop.permute.xlu0 %1121
      %1123 = vrot.lane.b32.xlu0 %v975, 12
      %v1124 = vpop.permute.xlu0 %1123
      %1125 = vrot.lane.b32.xlu0 %v1114, 12
      %v1126 = vpop.permute.xlu0 %1125
      %v1128 = vunpack.c.l.b16 %v942
      %v1129 = vpack.c.b16 %v1128, %v1128
      %v1131 = vshrl.u32 %v1114, 16
      %v1133 = vshll.u32 %v1114, 16
      %v1135 = vrot.slane %v1133, 1
      %v1136 = vor.u32 %v1131, %v1135
      %v1138 = vshll.u32 %v1129, 16
      %v1140 = vrot.slane %v1138, 1
      %v1141 = vsel %vm994, %v1136, %v1140
      %1142 = vrot.lane.b32.xlu0 %v1018, 16
      %v1143 = vpop.permute.xlu0 %1142
      %1144 = vrot.lane.b32.xlu0 %v1030, 16
      %v1145 = vpop.permute.xlu0 %1144
      %1146 = vrot.lane.b32.xlu0 %v1042, 16
      %v1147 = vpop.permute.xlu0 %1146
      %1148 = vrot.lane.b32.xlu0 %v1054, 16
      %v1149 = vpop.permute.xlu0 %1148
      %1150 = vrot.lane.b32.xlu0 %v1066, 16
      %v1151 = vpop.permute.xlu0 %1150
      %1152 = vrot.lane.b32.xlu0 %v1141, 16
      %v1153 = vpop.permute.xlu0 %1152
      %v1154 = vrot.slane %v1114, 1
      %v1155 = vrot.slane %v1129, 1
      %v1156 = vsel %vm1079, %v1154, %v1155
      %1157 = vrot.lane.b32.xlu0 %v1085, 20
      %v1158 = vpop.permute.xlu0 %1157
      %1159 = vrot.lane.b32.xlu0 %v1088, 20
      %v1160 = vpop.permute.xlu0 %1159
      %1161 = vrot.lane.b32.xlu0 %v1091, 20
      %v1162 = vpop.permute.xlu0 %1161
      %1163 = vrot.lane.b32.xlu0 %v1094, 20
      %v1164 = vpop.permute.xlu0 %1163
      %1165 = vrot.lane.b32.xlu0 %v1097, 20
      %v1166 = vpop.permute.xlu0 %1165
      %1167 = vrot.lane.b32.xlu0 %v1156, 20
      %v1168 = vpop.permute.xlu0 %1167
      %v1171 = vunpack.c.l.b16 %v943
      %v1172 = vunpack.c.l.b16 %v944
      %v1173 = vpack.c.b16 %v1172, %v1171
      %1174 = vrot.lane.b32.xlu0 %v972, 24
      %v1175 = vpop.permute.xlu0 %1174
      %1176 = vrot.lane.b32.xlu0 %v973, 24
      %v1177 = vpop.permute.xlu0 %1176
      %1178 = vrot.lane.b32.xlu0 %v974, 24
      %v1179 = vpop.permute.xlu0 %1178
      %1180 = vrot.lane.b32.xlu0 %v975, 24
      %v1181 = vpop.permute.xlu0 %1180
      %1182 = vrot.lane.b32.xlu0 %v1114, 24
      %v1183 = vpop.permute.xlu0 %1182
      %1184 = vrot.lane.b32.xlu0 %v1173, 24
      %v1185 = vpop.permute.xlu0 %1184
      %v1187 = vunpack.c.l.b16 %v945
      %v1188 = vpack.c.b16 %v1187, %v1187
      %v1190 = vshrl.u32 %v1173, 16
      %v1192 = vshll.u32 %v1173, 16
      %v1194 = vrot.slane %v1192, 1
      %v1195 = vor.u32 %v1190, %v1194
      %v1197 = vshll.u32 %v1188, 16
      %v1199 = vrot.slane %v1197, 1
      %v1200 = vsel %vm994, %v1195, %v1199
      %1201 = vrot.lane.b32.xlu0 %v1030, 28
      %v1202 = vpop.permute.xlu0 %1201
      %1203 = vrot.lane.b32.xlu0 %v1042, 28
      %v1204 = vpop.permute.xlu0 %1203
      %1205 = vrot.lane.b32.xlu0 %v1054, 28
      %v1206 = vpop.permute.xlu0 %1205
      %1207 = vrot.lane.b32.xlu0 %v1066, 28
      %v1208 = vpop.permute.xlu0 %1207
      %1209 = vrot.lane.b32.xlu0 %v1141, 28
      %v1210 = vpop.permute.xlu0 %1209
      %1211 = vrot.lane.b32.xlu0 %v1200, 28
      %v1212 = vpop.permute.xlu0 %1211
      %v1213 = vrot.slane %v1173, 1
      %v1214 = vrot.slane %v1188, 1
      %v1215 = vsel %vm1079, %v1213, %v1214
      %1216 = vrot.lane.b32.xlu0 %v1088, 32
      %v1217 = vpop.permute.xlu0 %1216
      %1218 = vrot.lane.b32.xlu0 %v1091, 32
      %v1219 = vpop.permute.xlu0 %1218
      %1220 = vrot.lane.b32.xlu0 %v1094, 32
      %v1221 = vpop.permute.xlu0 %1220
      %1222 = vrot.lane.b32.xlu0 %v1097, 32
      %v1223 = vpop.permute.xlu0 %1222
      %1224 = vrot.lane.b32.xlu0 %v1156, 32
      %v1225 = vpop.permute.xlu0 %1224
      %1226 = vrot.lane.b32.xlu0 %v1215, 32
      %v1227 = vpop.permute.xlu0 %1226
      %vm1228 = vcmask 31744
      %v1230 = vsel %vm1228, %v970, %v1068
      %v1232 = vsel %vm1228, %v971, %v1070
      %v1234 = vsel %vm1228, %v972, %v1072
      %v1236 = vsel %vm1228, %v973, %v1074
      %v1238 = vsel %vm1228, %v974, %v1076
      %v1240 = vsel %vm1228, %v975, %v1078
      %vm1241 = vcmask 64512
      %v1243 = vsel %vm1241, %v1230, %v1099
      %v1245 = vsel %vm1241, %v1232, %v1101
      %v1247 = vsel %vm1241, %v1234, %v1103
      %v1249 = vsel %vm1241, %v1236, %v1105
      %v1251 = vsel %vm1241, %v1238, %v1107
      %v1253 = vsel %vm1241, %v1240, %v1109
      %vm1254 = vcmask 97280
      %v1256 = vsel %vm1254, %v1243, %v1116
      %v1258 = vsel %vm1254, %v1245, %v1118
      %v1260 = vsel %vm1254, %v1247, %v1120
      %v1262 = vsel %vm1254, %v1249, %v1122
      %v1264 = vsel %vm1254, %v1251, %v1124
      %v1266 = vsel %vm1254, %v1253, %v1126
      %vm1267 = vcmask 130048
      %v1269 = vsel %vm1267, %v1256, %v1143
      %v1271 = vsel %vm1267, %v1258, %v1145
      %v1273 = vsel %vm1267, %v1260, %v1147
      %v1275 = vsel %vm1267, %v1262, %v1149
      %v1277 = vsel %vm1267, %v1264, %v1151
      %v1279 = vsel %vm1267, %v1266, %v1153
      %vm1280 = vcmask 162816
      %v1282 = vsel %vm1280, %v1269, %v1158
      %v1284 = vsel %vm1280, %v1271, %v1160
      %v1286 = vsel %vm1280, %v1273, %v1162
      %v1288 = vsel %vm1280, %v1275, %v1164
      %v1290 = vsel %vm1280, %v1277, %v1166
      %v1292 = vsel %vm1280, %v1279, %v1168
      %vm1293 = vcmask 195584
      %v1295 = vsel %vm1293, %v1282, %v1175
      %v1297 = vsel %vm1293, %v1284, %v1177
      %v1299 = vsel %vm1293, %v1286, %v1179
      %v1301 = vsel %vm1293, %v1288, %v1181
      %v1303 = vsel %vm1293, %v1290, %v1183
      %v1305 = vsel %vm1293, %v1292, %v1185
      %vm1306 = vcmask 228352
      %v1308 = vsel %vm1306, %v1295, %v1202
      %v1310 = vsel %vm1306, %v1297, %v1204
      %v1312 = vsel %vm1306, %v1299, %v1206
      %v1314 = vsel %vm1306, %v1301, %v1208
      %v1316 = vsel %vm1306, %v1303, %v1210
      %v1318 = vsel %vm1306, %v1305, %v1212
      %vm1319 = vcmask 261120
      %v1321 = vsel %vm1319, %v1308, %v1217
      %v1323 = vsel %vm1319, %v1310, %v1219
      %v1325 = vsel %vm1319, %v1312, %v1221
      %v1327 = vsel %vm1319, %v1314, %v1223
      %v1329 = vsel %vm1319, %v1316, %v1225
      %v1331 = vsel %vm1319, %v1318, %v1227
      %v1332 = vld [vmem:[%s1] sm:$0xf]
      %v1333 = vld [vmem:[%s1 + $0x4] sm:$0xf]
      %v1334 = vld [vmem:[%s1 + $0x8] sm:$0xf]
      %v1335 = vld [vmem:[%s1 + $0xc] sm:$0xf]
      %v1336 = vld [vmem:[%s1 + $0x10] sm:$0x3]
      %v1342 = vunpack.c.l.b16 %v1332
      %v1343 = vunpack.c.l.b16 %v1333
      %v1344 = vunpack.c.l.b16 %v1334
      %v1345 = vunpack.c.l.b16 %v1335
      %v1346 = vunpack.c.l.b16 %v1336
      %v1347 = vpack.c.b16 %v1343, %v1342
      %v1348 = vpack.c.b16 %v1345, %v1344
      %v1349 = vpack.c.b16 %v1346, %v1346
      %vm1352 = vcmask 293888
      %v1353 = vsel %vm1352, %v1321, 0
      %v1355 = vsel %vm1352, %v1323, 0
      %v1357 = vsel %vm1352, %v1325, 0
      %v1359 = vsel %vm1352, %v1327, 0
      %v1361 = vsel %vm1352, %v1329, 0
      %v1363 = vsel %vm1352, %v1331, 0
      %vm1365 = vcmask 1041408
      %v1367 = vsel %vm1365, %v1349, 0
      %1369 = vmatpush.bf16.msra.mxu0 0
      %1370 = vmatpush.bf16.msra.mxu0 0
      %1371 = vmatpush.bf16.msra.mxu0 0
      %1372 = vmatpush.bf16.msra.mxu0 0
      %1373 = vmatpush.bf16.msra.mxu0 0
      %1374 = vmatpush.bf16.msra.mxu0 %v1367
      %1375 = vmatpush.bf16.msra.mxu0 %v1348
      %1376 = vmatpush.bf16.msra.mxu0 %v1347
      %1377 = vmatmul.bf16.gmra.mxu0 %v1353
      %v1378 = vpop.f32.mrf.mxu0
      %v1379 = vadd.f32 0.0, %v1378
      %v1380 = vpop.f32.mrf.mxu0
      %v1381 = vadd.f32 0.0, %v1380
      %1382 = vmatmul.bf16.gmra.mxu0 %v1355
      %v1383 = vpop.f32.mrf.mxu0
      %v1384 = vadd.f32 0.0, %v1383
      %v1385 = vpop.f32.mrf.mxu0
      %v1386 = vadd.f32 0.0, %v1385
      %1387 = vmatmul.bf16.gmra.mxu0 %v1357
      %v1388 = vpop.f32.mrf.mxu0
      %v1389 = vadd.f32 0.0, %v1388
      %v1390 = vpop.f32.mrf.mxu0
      %v1391 = vadd.f32 0.0, %v1390
      %1392 = vmatmul.bf16.gmra.mxu0 %v1359
      %v1393 = vpop.f32.mrf.mxu0
      %v1394 = vadd.f32 0.0, %v1393
      %v1395 = vpop.f32.mrf.mxu0
      %v1396 = vadd.f32 0.0, %v1395
      %1397 = vmatmul.bf16.gmra.mxu0 %v1361
      %v1398 = vpop.f32.mrf.mxu0
      %v1399 = vadd.f32 0.0, %v1398
      %v1400 = vpop.f32.mrf.mxu0
      %v1401 = vadd.f32 0.0, %v1400
      %1402 = vmatmul.bf16.gmra.mxu0 %v1363
      %v1403 = vpop.f32.mrf.mxu0
      %v1404 = vadd.f32 0.0, %v1403
      %v1405 = vpop.f32.mrf.mxu0
      %v1406 = vadd.f32 0.0, %v1405
      %1407 = vdwg.mxu0
      %v1408 = vld [vmem:[%s2] sm:$0x1]
      %v1410 = vperm.slane %v1408, 0
      %v1412 = vmul.f32 %v1379, %v1410
      %v1413 = vmul.f32 %v1381, %v1410
      %v1414 = vmul.f32 %v1384, %v1410
      %v1415 = vmul.f32 %v1386, %v1410
      %v1416 = vmul.f32 %v1389, %v1410
      %v1417 = vmul.f32 %v1391, %v1410
      %v1418 = vmul.f32 %v1394, %v1410
      %v1419 = vmul.f32 %v1396, %v1410
      %v1420 = vmul.f32 %v1399, %v1410
      %v1421 = vmul.f32 %v1401, %v1410
      %v1422 = vmul.f32 %v1404, %v1410
      %v1423 = vmul.f32 %v1406, %v1410
      %v1424 = vld [vmem:[%s3] sm:$0x1]
      %v1426 = vperm.slane %v1424, 0
      %v1428 = vadd.f32 %v1412, %v1426
      %v1429 = vadd.f32 %v1413, %v1426
      %v1430 = vadd.f32 %v1414, %v1426
      %v1431 = vadd.f32 %v1415, %v1426
      %v1432 = vadd.f32 %v1416, %v1426
      %v1433 = vadd.f32 %v1417, %v1426
      %v1434 = vadd.f32 %v1418, %v1426
      %v1435 = vadd.f32 %v1419, %v1426
      %v1436 = vadd.f32 %v1420, %v1426
      %v1437 = vadd.f32 %v1421, %v1426
      %v1438 = vadd.f32 %v1422, %v1426
      %v1439 = vadd.f32 %v1423, %v1426
      %v1440 = vmax.f32 %v1428, 0.0
      %v1441 = vmax.f32 %v1429, 0.0
      %v1442 = vmax.f32 %v1430, 0.0
      %v1443 = vmax.f32 %v1431, 0.0
      %v1444 = vmax.f32 %v1432, 0.0
      %v1445 = vmax.f32 %v1433, 0.0
      %v1446 = vmax.f32 %v1434, 0.0
      %v1447 = vmax.f32 %v1435, 0.0
      %v1448 = vmax.f32 %v1436, 0.0
      %v1449 = vmax.f32 %v1437, 0.0
      %v1450 = vmax.f32 %v1438, 0.0
      %v1451 = vmax.f32 %v1439, 0.0
      %s1452 = ssub.s32 %s305, 1
      %v1453 = vstv %s1452
      %v1454 = vadd.s32 %v1453, 1
      %v1455 = vadd.s32 %v1453, 2
      %v1456 = vadd.s32 %v1453, 3
      %v1457 = vadd.s32 %v1453, 4
      %v1458 = vadd.s32 %v1453, 5
      %vm1459 = vcmp.ge.s32.totalorder %v1453, 0
      %vm1460 = vcmp.ge.s32.totalorder %v1454, 0
      %vm1461 = vcmp.ge.s32.totalorder %v1455, 0
      %vm1462 = vcmp.ge.s32.totalorder %v1456, 0
      %vm1463 = vcmp.ge.s32.totalorder %v1457, 0
      %vm1464 = vcmp.ge.s32.totalorder %v1458, 0
      %vm1465 = vcmp.lt.s32.totalorder %v1453, 16
      %vm1466 = vcmp.lt.s32.totalorder %v1454, 16
      %vm1467 = vcmp.lt.s32.totalorder %v1455, 16
      %vm1468 = vcmp.lt.s32.totalorder %v1456, 16
      %vm1469 = vcmp.lt.s32.totalorder %v1457, 16
      %vm1470 = vcmp.lt.s32.totalorder %v1458, 16
      %vm1471 = vmand %vm1459, %vm1465
      %vm1472 = vmand %vm1460, %vm1466
      %vm1473 = vmand %vm1461, %vm1467
      %vm1474 = vmand %vm1462, %vm1468
      %vm1475 = vmand %vm1463, %vm1469
      %vm1476 = vmand %vm1464, %vm1470
      %v1477 = vsel %vm1471, 1, 0
      %v1478 = vsel %vm1472, 1, 0
      %v1479 = vsel %vm1473, 1, 0
      %v1480 = vsel %vm1474, 1, 0
      %v1481 = vsel %vm1475, 1, 0
      %v1482 = vsel %vm1476, 1, 0
      %vm1483 = vcmp.eq.s32.totalorder %v1477, 1
      %vm1484 = vcmp.eq.s32.totalorder %v1478, 1
      %vm1485 = vcmp.eq.s32.totalorder %v1479, 1
      %vm1486 = vcmp.eq.s32.totalorder %v1480, 1
      %vm1487 = vcmp.eq.s32.totalorder %v1481, 1
      %vm1488 = vcmp.eq.s32.totalorder %v1482, 1
      %v1489 = vsel %vm1483, %v1440, 0.0
      %v1490 = vsel %vm1483, %v1441, 0.0
      %v1491 = vsel %vm1484, %v1442, 0.0
      %v1492 = vsel %vm1484, %v1443, 0.0
      %v1493 = vsel %vm1485, %v1444, 0.0
      %v1494 = vsel %vm1485, %v1445, 0.0
      %v1495 = vsel %vm1486, %v1446, 0.0
      %v1496 = vsel %vm1486, %v1447, 0.0
      %v1497 = vsel %vm1487, %v1448, 0.0
      %v1498 = vsel %vm1487, %v1449, 0.0
      %v1499 = vsel %vm1488, %v1450, 0.0
      %v1500 = vsel %vm1488, %v1451, 0.0
      %vm1513 = vcmask 1040384
      %v1514 = vrot.slane %v1489, 7
      %v1515 = vrot.slane %v1490, 7
      %v1516 = vsel %vm1513, %v1514, %v1515
      %v1517 = vrot.slane %v1491, 7
      %v1518 = vrot.slane %v1492, 7
      %v1519 = vsel %vm1513, %v1517, %v1518
      %v1520 = vrot.slane %v1493, 7
      %v1521 = vrot.slane %v1494, 7
      %v1522 = vsel %vm1513, %v1520, %v1521
      %v1523 = vrot.slane %v1495, 7
      %v1524 = vrot.slane %v1496, 7
      %v1525 = vsel %vm1513, %v1523, %v1524
      %v1526 = vrot.slane %v1497, 7
      %v1527 = vrot.slane %v1498, 7
      %v1528 = vsel %vm1513, %v1526, %v1527
      %v1529 = vrot.slane %v1499, 7
      %v1530 = vrot.slane %v1500, 7
      %v1531 = vsel %vm1513, %v1529, %v1530
      %v1550 = vsel %vm1513, 0.0, %v1514
      %v1551 = vsel %vm1513, 0.0, %v1517
      %v1552 = vsel %vm1513, 0.0, %v1520
      %v1553 = vsel %vm1513, 0.0, %v1523
      %v1554 = vsel %vm1513, 0.0, %v1526
      %v1555 = vsel %vm1513, 0.0, %v1529
      %v1556 = vsel %vm1513, %v1515, 0.0
      %v1557 = vsel %vm1513, %v1518, 0.0
      %v1558 = vsel %vm1513, %v1521, 0.0
      %v1559 = vsel %vm1513, %v1524, 0.0
      %v1560 = vsel %vm1513, %v1527, 0.0
      %v1561 = vsel %vm1513, %v1530, 0.0
      %v1562 = vpack.c.bf16 %v1550, %v1550
      %v1563 = vpack.c.bf16 %v1516, %v1516
      %v1564 = vpack.c.bf16 %v1556, %v1556
      %v1565 = vpack.c.bf16 %v1551, %v1551
      %v1566 = vpack.c.bf16 %v1519, %v1519
      %v1567 = vpack.c.bf16 %v1557, %v1557
      %v1568 = vpack.c.bf16 %v1552, %v1552
      %v1569 = vpack.c.bf16 %v1522, %v1522
      %v1570 = vpack.c.bf16 %v1558, %v1558
      %v1571 = vpack.c.bf16 %v1553, %v1553
      %v1572 = vpack.c.bf16 %v1525, %v1525
      %v1573 = vpack.c.bf16 %v1559, %v1559
      %v1574 = vpack.c.bf16 %v1554, %v1554
      %v1575 = vpack.c.bf16 %v1528, %v1528
      %v1576 = vpack.c.bf16 %v1560, %v1560
      %v1577 = vpack.c.bf16 %v1555, %v1555
      %v1578 = vpack.c.bf16 %v1531, %v1531
      %v1579 = vpack.c.bf16 %v1561, %v1561
      %v1588 = vunpack.c.l.b16 %v1562
      %v1589 = vunpack.c.l.b16 %v1563
      %v1590 = vunpack.c.l.b16 %v1565
      %v1591 = vunpack.c.l.b16 %v1566
      %v1592 = vunpack.c.l.b16 %v1568
      %v1593 = vunpack.c.l.b16 %v1569
      %v1594 = vunpack.c.l.b16 %v1571
      %v1595 = vunpack.c.l.b16 %v1572
      %v1596 = vpack.c.b16 %v1589, %v1588
      %v1597 = vpack.c.b16 %v1591, %v1590
      %v1598 = vpack.c.b16 %v1593, %v1592
      %v1599 = vpack.c.b16 %v1595, %v1594
      %v1604 = vunpack.c.l.b16 %v1564
      %v1605 = vunpack.c.l.b16 %v1567
      %v1606 = vunpack.c.l.b16 %v1570
      %v1607 = vunpack.c.l.b16 %v1573
      %v1608 = vpack.c.b16 %v1604, %v1604
      %v1609 = vpack.c.b16 %v1605, %v1605
      %v1610 = vpack.c.b16 %v1606, %v1606
      %v1611 = vpack.c.b16 %v1607, %v1607
      %v1613 = vshrl.u32 %v1596, 16
      %v1615 = vshll.u32 %v1596, 16
      %v1617 = vrot.slane %v1615, 1
      %v1618 = vor.u32 %v1613, %v1617
      %v1620 = vshll.u32 %v1608, 16
      %v1622 = vrot.slane %v1620, 1
      %v1623 = vsel %vm994, %v1618, %v1622
      %v1625 = vshrl.u32 %v1597, 16
      %v1627 = vshll.u32 %v1597, 16
      %v1629 = vrot.slane %v1627, 1
      %v1630 = vor.u32 %v1625, %v1629
      %v1632 = vshll.u32 %v1609, 16
      %v1634 = vrot.slane %v1632, 1
      %v1635 = vsel %vm994, %v1630, %v1634
      %v1637 = vshrl.u32 %v1598, 16
      %v1639 = vshll.u32 %v1598, 16
      %v1641 = vrot.slane %v1639, 1
      %v1642 = vor.u32 %v1637, %v1641
      %v1644 = vshll.u32 %v1610, 16
      %v1646 = vrot.slane %v1644, 1
      %v1647 = vsel %vm994, %v1642, %v1646
      %v1649 = vshrl.u32 %v1599, 16
      %v1651 = vshll.u32 %v1599, 16
      %v1653 = vrot.slane %v1651, 1
      %v1654 = vor.u32 %v1649, %v1653
      %v1656 = vshll.u32 %v1611, 16
      %v1658 = vrot.slane %v1656, 1
      %v1659 = vsel %vm994, %v1654, %v1658
      %1660 = vrot.lane.b32.xlu0 %v1623, 4
      %v1661 = vpop.permute.xlu0 %1660
      %1662 = vrot.lane.b32.xlu0 %v1635, 4
      %v1663 = vpop.permute.xlu0 %1662
      %1664 = vrot.lane.b32.xlu0 %v1647, 4
      %v1665 = vpop.permute.xlu0 %1664
      %1666 = vrot.lane.b32.xlu0 %v1659, 4
      %v1667 = vpop.permute.xlu0 %1666
      %v1668 = vrot.slane %v1596, 1
      %v1669 = vrot.slane %v1608, 1
      %v1670 = vsel %vm1079, %v1668, %v1669
      %v1671 = vrot.slane %v1597, 1
      %v1672 = vrot.slane %v1609, 1
      %v1673 = vsel %vm1079, %v1671, %v1672
      %v1674 = vrot.slane %v1598, 1
      %v1675 = vrot.slane %v1610, 1
      %v1676 = vsel %vm1079, %v1674, %v1675
      %v1677 = vrot.slane %v1599, 1
      %v1678 = vrot.slane %v1611, 1
      %v1679 = vsel %vm1079, %v1677, %v1678
      %1680 = vrot.lane.b32.xlu0 %v1670, 8
      %v1681 = vpop.permute.xlu0 %1680
      %1682 = vrot.lane.b32.xlu0 %v1673, 8
      %v1683 = vpop.permute.xlu0 %1682
      %1684 = vrot.lane.b32.xlu0 %v1676, 8
      %v1685 = vpop.permute.xlu0 %1684
      %1686 = vrot.lane.b32.xlu0 %v1679, 8
      %v1687 = vpop.permute.xlu0 %1686
      %v1690 = vunpack.c.l.b16 %v1574
      %v1691 = vunpack.c.l.b16 %v1575
      %v1692 = vpack.c.b16 %v1691, %v1690
      %1693 = vrot.lane.b32.xlu0 %v1597, 12
      %v1694 = vpop.permute.xlu0 %1693
      %1695 = vrot.lane.b32.xlu0 %v1598, 12
      %v1696 = vpop.permute.xlu0 %1695
      %1697 = vrot.lane.b32.xlu0 %v1599, 12
      %v1698 = vpop.permute.xlu0 %1697
      %1699 = vrot.lane.b32.xlu0 %v1692, 12
      %v1700 = vpop.permute.xlu0 %1699
      %v1702 = vunpack.c.l.b16 %v1576
      %v1703 = vpack.c.b16 %v1702, %v1702
      %v1705 = vshrl.u32 %v1692, 16
      %v1707 = vshll.u32 %v1692, 16
      %v1709 = vrot.slane %v1707, 1
      %v1710 = vor.u32 %v1705, %v1709
      %v1712 = vshll.u32 %v1703, 16
      %v1714 = vrot.slane %v1712, 1
      %v1715 = vsel %vm994, %v1710, %v1714
      %1716 = vrot.lane.b32.xlu0 %v1635, 16
      %v1717 = vpop.permute.xlu0 %1716
      %1718 = vrot.lane.b32.xlu0 %v1647, 16
      %v1719 = vpop.permute.xlu0 %1718
      %1720 = vrot.lane.b32.xlu0 %v1659, 16
      %v1721 = vpop.permute.xlu0 %1720
      %1722 = vrot.lane.b32.xlu0 %v1715, 16
      %v1723 = vpop.permute.xlu0 %1722
      %v1724 = vrot.slane %v1692, 1
      %v1725 = vrot.slane %v1703, 1
      %v1726 = vsel %vm1079, %v1724, %v1725
      %1727 = vrot.lane.b32.xlu0 %v1673, 20
      %v1728 = vpop.permute.xlu0 %1727
      %1729 = vrot.lane.b32.xlu0 %v1676, 20
      %v1730 = vpop.permute.xlu0 %1729
      %1731 = vrot.lane.b32.xlu0 %v1679, 20
      %v1732 = vpop.permute.xlu0 %1731
      %1733 = vrot.lane.b32.xlu0 %v1726, 20
      %v1734 = vpop.permute.xlu0 %1733
      %v1737 = vunpack.c.l.b16 %v1577
      %v1738 = vunpack.c.l.b16 %v1578
      %v1739 = vpack.c.b16 %v1738, %v1737
      %1740 = vrot.lane.b32.xlu0 %v1598, 24
      %v1741 = vpop.permute.xlu0 %1740
      %1742 = vrot.lane.b32.xlu0 %v1599, 24
      %v1743 = vpop.permute.xlu0 %1742
      %1744 = vrot.lane.b32.xlu0 %v1692, 24
      %v1745 = vpop.permute.xlu0 %1744
      %1746 = vrot.lane.b32.xlu0 %v1739, 24
      %v1747 = vpop.permute.xlu0 %1746
      %v1749 = vunpack.c.l.b16 %v1579
      %v1750 = vpack.c.b16 %v1749, %v1749
      %v1752 = vshrl.u32 %v1739, 16
      %v1754 = vshll.u32 %v1739, 16
      %v1756 = vrot.slane %v1754, 1
      %v1757 = vor.u32 %v1752, %v1756
      %v1759 = vshll.u32 %v1750, 16
      %v1761 = vrot.slane %v1759, 1
      %v1762 = vsel %vm994, %v1757, %v1761
      %1763 = vrot.lane.b32.xlu0 %v1647, 28
      %v1764 = vpop.permute.xlu0 %1763
      %1765 = vrot.lane.b32.xlu0 %v1659, 28
      %v1766 = vpop.permute.xlu0 %1765
      %1767 = vrot.lane.b32.xlu0 %v1715, 28
      %v1768 = vpop.permute.xlu0 %1767
      %1769 = vrot.lane.b32.xlu0 %v1762, 28
      %v1770 = vpop.permute.xlu0 %1769
      %v1771 = vrot.slane %v1739, 1
      %v1772 = vrot.slane %v1750, 1
      %v1773 = vsel %vm1079, %v1771, %v1772
      %1774 = vrot.lane.b32.xlu0 %v1676, 32
      %v1775 = vpop.permute.xlu0 %1774
      %1776 = vrot.lane.b32.xlu0 %v1679, 32
      %v1777 = vpop.permute.xlu0 %1776
      %1778 = vrot.lane.b32.xlu0 %v1726, 32
      %v1779 = vpop.permute.xlu0 %1778
      %1780 = vrot.lane.b32.xlu0 %v1773, 32
      %v1781 = vpop.permute.xlu0 %1780
      %v1783 = vsel %vm1228, %v1596, %v1661
      %v1785 = vsel %vm1228, %v1597, %v1663
      %v1787 = vsel %vm1228, %v1598, %v1665
      %v1789 = vsel %vm1228, %v1599, %v1667
      %v1791 = vsel %vm1241, %v1783, %v1681
      %v1793 = vsel %vm1241, %v1785, %v1683
      %v1795 = vsel %vm1241, %v1787, %v1685
      %v1797 = vsel %vm1241, %v1789, %v1687
      %v1799 = vsel %vm1254, %v1791, %v1694
      %v1801 = vsel %vm1254, %v1793, %v1696
      %v1803 = vsel %vm1254, %v1795, %v1698
      %v1805 = vsel %vm1254, %v1797, %v1700
      %v1807 = vsel %vm1267, %v1799, %v1717
      %v1809 = vsel %vm1267, %v1801, %v1719
      %v1811 = vsel %vm1267, %v1803, %v1721
      %v1813 = vsel %vm1267, %v1805, %v1723
      %v1815 = vsel %vm1280, %v1807, %v1728
      %v1817 = vsel %vm1280, %v1809, %v1730
      %v1819 = vsel %vm1280, %v1811, %v1732
      %v1821 = vsel %vm1280, %v1813, %v1734
      %v1823 = vsel %vm1293, %v1815, %v1741
      %v1825 = vsel %vm1293, %v1817, %v1743
      %v1827 = vsel %vm1293, %v1819, %v1745
      %v1829 = vsel %vm1293, %v1821, %v1747
      %v1831 = vsel %vm1306, %v1823, %v1764
      %v1833 = vsel %vm1306, %v1825, %v1766
      %v1835 = vsel %vm1306, %v1827, %v1768
      %v1837 = vsel %vm1306, %v1829, %v1770
      %v1839 = vsel %vm1319, %v1831, %v1775
      %v1841 = vsel %vm1319, %v1833, %v1777
      %v1843 = vsel %vm1319, %v1835, %v1779
      %v1845 = vsel %vm1319, %v1837, %v1781
      %v1846 = vld [vmem:[%s4] sm:$0xf]
      %v1847 = vld [vmem:[%s4 + $0x4] sm:$0xf]
      %v1848 = vld [vmem:[%s4 + $0x8] sm:$0xf]
      %v1849 = vld [vmem:[%s4 + $0xc] sm:$0xf]
      %v1850 = vld [vmem:[%s4 + $0x10] sm:$0x3]
      %v1856 = vunpack.c.l.b16 %v1846
      %v1857 = vunpack.c.l.b16 %v1847
      %v1858 = vunpack.c.l.b16 %v1848
      %v1859 = vunpack.c.l.b16 %v1849
      %v1860 = vunpack.c.l.b16 %v1850
      %v1861 = vpack.c.b16 %v1857, %v1856
      %v1862 = vpack.c.b16 %v1859, %v1858
      %v1863 = vpack.c.b16 %v1860, %v1860
      %v1866 = vsel %vm1352, %v1839, 0
      %v1868 = vsel %vm1352, %v1841, 0
      %v1870 = vsel %vm1352, %v1843, 0
      %v1872 = vsel %vm1352, %v1845, 0
      %v1875 = vsel %vm1365, %v1863, 0
      %1877 = vmatpush.bf16.msra.mxu0 0
      %1878 = vmatpush.bf16.msra.mxu0 0
      %1879 = vmatpush.bf16.msra.mxu0 0
      %1880 = vmatpush.bf16.msra.mxu0 0
      %1881 = vmatpush.bf16.msra.mxu0 0
      %1882 = vmatpush.bf16.msra.mxu0 %v1875
      %1883 = vmatpush.bf16.msra.mxu0 %v1862
      %1884 = vmatpush.bf16.msra.mxu0 %v1861
      %1885 = vmatmul.bf16.gmra.mxu0 %v1866
      %v1886 = vpop.f32.mrf.mxu0
      %v1887 = vadd.f32 0.0, %v1886
      %v1888 = vpop.f32.mrf.mxu0
      %v1889 = vadd.f32 0.0, %v1888
      %1890 = vmatmul.bf16.gmra.mxu0 %v1868
      %v1891 = vpop.f32.mrf.mxu0
      %v1892 = vadd.f32 0.0, %v1891
      %v1893 = vpop.f32.mrf.mxu0
      %v1894 = vadd.f32 0.0, %v1893
      %1895 = vmatmul.bf16.gmra.mxu0 %v1870
      %v1896 = vpop.f32.mrf.mxu0
      %v1897 = vadd.f32 0.0, %v1896
      %v1898 = vpop.f32.mrf.mxu0
      %v1899 = vadd.f32 0.0, %v1898
      %1900 = vmatmul.bf16.gmra.mxu0 %v1872
      %v1901 = vpop.f32.mrf.mxu0
      %v1902 = vadd.f32 0.0, %v1901
      %v1903 = vpop.f32.mrf.mxu0
      %v1904 = vadd.f32 0.0, %v1903
      %1905 = vdwg.mxu0
      %v1906 = vld [vmem:[%s5] sm:$0x1]
      %v1908 = vperm.slane %v1906, 0
      %v1910 = vmul.f32 %v1887, %v1908
      %v1911 = vmul.f32 %v1889, %v1908
      %v1912 = vmul.f32 %v1892, %v1908
      %v1913 = vmul.f32 %v1894, %v1908
      %v1914 = vmul.f32 %v1897, %v1908
      %v1915 = vmul.f32 %v1899, %v1908
      %v1916 = vmul.f32 %v1902, %v1908
      %v1917 = vmul.f32 %v1904, %v1908
      %v1918 = vld [vmem:[%s6] sm:$0x1]
      %v1920 = vperm.slane %v1918, 0
      %v1922 = vadd.f32 %v1910, %v1920
      %v1923 = vadd.f32 %v1911, %v1920
      %v1924 = vadd.f32 %v1912, %v1920
      %v1925 = vadd.f32 %v1913, %v1920
      %v1926 = vadd.f32 %v1914, %v1920
      %v1927 = vadd.f32 %v1915, %v1920
      %v1928 = vadd.f32 %v1916, %v1920
      %v1929 = vadd.f32 %v1917, %v1920
      %s1930 = smul.u32 %s305, 2
      %s1931 = smul.addr %s1930, 4
      %s1932 = scalar_lea.vmem %s292, %s1931
      %v1933 = vld [vmem:[%s1932] sm:$0xf]
      %v1934 = vld [vmem:[%s1932 + $0x4] sm:$0xf]
      %v1935 = vld [vmem:[%s1932 + $0x8] sm:$0xf]
      %v1936 = vld [vmem:[%s1932 + $0xc] sm:$0xf]
      %v1937 = vld [vmem:[%s1932 + $0x10] sm:$0xf]
      %v1938 = vld [vmem:[%s1932 + $0x14] sm:$0xf]
      %v1939 = vld [vmem:[%s1932 + $0x18] sm:$0xf]
      %v1940 = vld [vmem:[%s1932 + $0x1c] sm:$0xf]
      %v1941 = vunpack.c.l.bf16 %v1933
      %v1942 = vunpack.c.l.bf16 %v1934
      %v1943 = vunpack.c.l.bf16 %v1935
      %v1944 = vunpack.c.l.bf16 %v1936
      %v1945 = vunpack.c.l.bf16 %v1937
      %v1946 = vunpack.c.l.bf16 %v1938
      %v1947 = vunpack.c.l.bf16 %v1939
      %v1948 = vunpack.c.l.bf16 %v1940
      %v1949 = vadd.f32 %v1922, %v1941
      %v1950 = vadd.f32 %v1923, %v1942
      %v1951 = vadd.f32 %v1924, %v1943
      %v1952 = vadd.f32 %v1925, %v1944
      %v1953 = vadd.f32 %v1926, %v1945
      %v1954 = vadd.f32 %v1927, %v1946
      %v1955 = vadd.f32 %v1928, %v1947
      %v1956 = vadd.f32 %v1929, %v1948
      %v1957 = vmax.f32 %v1949, 0.0
      %v1958 = vmax.f32 %v1950, 0.0
      %v1959 = vmax.f32 %v1951, 0.0
      %v1960 = vmax.f32 %v1952, 0.0
      %v1961 = vmax.f32 %v1953, 0.0
      %v1962 = vmax.f32 %v1954, 0.0
      %v1963 = vmax.f32 %v1955, 0.0
      %v1964 = vmax.f32 %v1956, 0.0
      %1965 = vst.msk [vmem:[%s302] sm:$0xff] %vm1228, %v1957
      %1966 = vst.msk [vmem:[%s302 + $0x8] sm:$0xff] %vm1228, %v1958
      %1967 = vst.msk [vmem:[%s302 + $0x10] sm:$0xff] %vm1228, %v1959
      %1968 = vst.msk [vmem:[%s302 + $0x18] sm:$0xff] %vm1228, %v1960
      %1969 = vst.msk [vmem:[%s302 + $0x20] sm:$0xff] %vm1228, %v1961
      %1970 = vst.msk [vmem:[%s302 + $0x28] sm:$0xff] %vm1228, %v1962
      %1971 = vst.msk [vmem:[%s302 + $0x30] sm:$0xff] %vm1228, %v1963
      %1972 = vst.msk [vmem:[%s302 + $0x38] sm:$0xff] %vm1228, %v1964
      %s1973 = smul.u32 4, %s23
      %p1974 = scmp.lt.s32.totalorder %s22, 1
      %s1975 = scalar_select %p1974, %s22, 1
      %p1976 = scmp.lt.s32.totalorder %s1973, 15
      %s1977 = scalar_select %p1976, %s1973, 15
      %s1978 = smul.addr %s1977, 2
      %s1979 = smul.addr %s1975, 32
      %s1980 = sadd.s32 %s1978, %s1979
      %s1981 = smul.addr %s1980, 8
      %s1982 = scalar_lea.vmem %s7, %s1981
      // Predicated region
      $region53: #{tpu_custom_call.1} parent=47 // pred_check
        %p1983 = pneg %p202
      $region54: #{tpu_custom_call.1} parent=47 // pred_check_branch
        %1985 = sbr.rel (%p1983) target = $region56
      $region55: #{tpu_custom_call.1} parent=47 // pred_region
        %s1986 = smul.u32 4, %s23
      $region56: #{tpu_custom_call.1} parent=47 // pred_fallthru
        _
    $region48: #{tpu_custom_call.1} parent=5 // pred_fallthru
      _
    %p1987 = scmp.le.s32.totalorder 2, %s13
    // Predicated region
    $region57: #{tpu_custom_call.1} parent=5 // pred_check
      %p1988 = pneg %p1987
    $region58: #{tpu_custom_call.1} parent=5 // pred_check_branch
      %1990 = sbr.rel (%p1988) target = $region60
    $region59: #{tpu_custom_call.1} parent=5 // pred_region
      %s1991 = ssub.s32 %s13, 2
      // Predicated region
      $region61: #{tpu_custom_call.1} parent=59 // pred_check
        %p1992 = pneg %p208
      $region62: #{tpu_custom_call.1} parent=59 // pred_check_branch
        %1994 = sbr.rel (%p1992) target = $region64
      $region63: #{tpu_custom_call.1} parent=59 // pred_region
        %s1995 = smul.u32 4, %s25
        %p1996 = scmp.lt.s32.totalorder %s24, 1
        %s1997 = scalar_select %p1996, %s24, 1
        %p1998 = scmp.lt.s32.totalorder %s1995, 15
        %s1999 = scalar_select %p1998, %s1995, 15
        %s2000 = smul.addr %s1999, 2
        %s2001 = smul.addr %s1997, 32
        %s2002 = sadd.s32 %s2000, %s2001
        %s2003 = smul.addr %s2002, 8
        %s2004 = scalar_lea.vmem %s7, %s2003
      $region64: #{tpu_custom_call.1} parent=59 // pred_fallthru
        _
    $region60: #{tpu_custom_call.1} parent=5 // pred_fallthru
      _
  $region6: #{tpu_custom_call.1} parent=0 // loop_footer
    %s17 = sadd.s32 1, %s13
  $region7: #{tpu_custom_call.1} parent=0 // loop_footer_branch
    %12 = sbr.rel target = $region3
  $region8: #{tpu_custom_call.1} parent=0 // loop_exit
    _

</llo_original>
